<compile_context>
chip_gen: v5e
topology: v5e:2x2
jax: 0.10.0
libtpu: 0.0.40
codegen_flags: <defaults>
</compile_context>

<pallas_src>
import functools

import jax
import jax.numpy as jnp
from jax.experimental import pallas as pl
from jax.experimental.pallas import tpu as pltpu


_LANES = 128
_DIFF_LANES = 128  # per-tile diff partial: one (1,128) VMEM row, one vst per step


def _round_up(a, b):
    return (a + b - 1) // b * b


# ----------------------------------------------------------------------------
# Packed kernel: dim < 128, 128 % dim == 0, dim % 8 == 0.
# x/q HBM slabs are viewed as (rows*dim/128, 128); packed row r holds logical
# rows g*r .. g*r+g-1 (g = 128/dim).
# ----------------------------------------------------------------------------
def _vq_kernel_packed(x_ref, e_ref, e2h_ref, q_ref, ind_ref, diff_ref, *,
                      n_valid, tile_n, dim, n_embed, g):
    i = pl.program_id(0)
    p = tile_n // g                       # packed rows in this tile

    e = e_ref[...]                        # (dim, n_embed) compute dtype (cast hoisted)
    e2h = e2h_ref[...]                    # (1, n_embed) f32 = 0.5*||e||^2 (hoisted)
    xp = x_ref[...]                       # (p, 128) lane-dense packed x tile

    q_chunks, ind_chunks, rowsq_chunks = [], [], []
    for c in range(g):
        # Logical rows g*r + c live in lanes [c*dim, (c+1)*dim) of packed row r.
        x_c = xp[:, c * dim:(c + 1) * dim]                           # (p, dim)
        x_cc = x_c if x_c.dtype == e.dtype else x_c.astype(e.dtype)

        # argmin_j ||x-e_j||^2 == argmin_j (0.5*||e_j||^2 - x.e_j): ||x||^2 dropped,
        # 0.5*||e||^2 precomputed in the wrapper.
        xe = jnp.dot(x_cc, e, preferred_element_type=jnp.float32)    # (p, n_embed) MXU
        dist = e2h - xe
        ind_c = jnp.argmin(dist, axis=1).astype(jnp.int32)           # (p,)
        ind_chunks.append(ind_c[None, :])

        # Gather e[:, ind] via one-hot matmul; contract n_embed on both operands
        # so no separate embed^T copy is shipped.
        iota = jax.lax.broadcasted_iota(jnp.int32, (p, n_embed), 1)
        onehot = (iota == ind_c[:, None]).astype(e.dtype)
        q_c = jax.lax.dot_general(onehot, e, (((1,), (1,)), ((), ())),
                                  preferred_element_type=jnp.float32)  # (p, dim)
        q_chunks.append(q_c.astype(q_ref.dtype))

        err = q_c - x_c.astype(jnp.float32)
        rowsq_chunks.append(jnp.sum(err * err, axis=1, keepdims=True))  # (p, 1)

    # Single full-lane-width (p, 128) store: byte-identical to the row-major
    # (tile_n, dim) slab in HBM, no masked 32-of-128-lane stores.
    q_ref[...] = jnp.concatenate(q_chunks, axis=1)

    # Indices emitted chunk-major within the tile (position c*p + r); the wrapper
    # un-permutes with a cheap transpose.  Avoids any in-kernel minor-dim reshape.
    ind_ref[...] = jnp.concatenate(ind_chunks, axis=1)               # (1, tile_n)

    num_tiles = pl.num_programs(0)

    @pl.when(i < num_tiles - 1)
    def _():  # interior tiles are fully valid: skip all mask work
        sq = jnp.float32(0.0)
        for c in range(g):
            sq = sq + jnp.sum(rowsq_chunks[c])
        diff_ref[...] = jnp.full((1, _DIFF_LANES), sq, dtype=jnp.float32)

    @pl.when(i == num_tiles - 1)
    def _():  # last tile masks padded rows
        base = i * tile_n
        r_iota = jax.lax.broadcasted_iota(jnp.int32, (p, 1), 0)
        sq = jnp.float32(0.0)
        for c in range(g):
            valid = ((base + r_iota * g + c) < n_valid).astype(jnp.float32)
            sq = sq + jnp.sum(valid * rowsq_chunks[c])
        diff_ref[...] = jnp.full((1, _DIFF_LANES), sq, dtype=jnp.float32)


# ----------------------------------------------------------------------------
# Unpacked fallback kernel: dim >= 128 (already lane-dense) or dim not packable.
# ----------------------------------------------------------------------------
def _vq_kernel(x_ref, e_ref, e2h_ref, q_ref, ind_ref, diff_ref, *,
               n_valid, tile_n, n_embed):
    i = pl.program_id(0)
    e = e_ref[...]                        # (dim, n_embed) compute dtype (cast hoisted)
    x = x_ref[...]                        # (tile_n, dim)
    xc = x if x.dtype == e.dtype else x.astype(e.dtype)

    xe = jnp.dot(xc, e, preferred_element_type=jnp.float32)          # MXU
    dist = e2h_ref[...] - xe                                         # (tile_n, n_embed)
    ind = jnp.argmin(dist, axis=1).astype(jnp.int32)
    ind_ref[...] = ind[None, :]                                      # lane-dense row

    iota = jax.lax.broadcasted_iota(jnp.int32, dist.shape, 1)
    onehot = (iota == ind[:, None]).astype(e.dtype)
    q = jax.lax.dot_general(onehot, e, (((1,), (1,)), ((), ())),
                            preferred_element_type=jnp.float32)      # (tile_n, dim)
    q_ref[...] = q.astype(q_ref.dtype)

    err = q - x.astype(jnp.float32)
    rowsq = jnp.sum(err * err, axis=1, keepdims=True)                # (tile_n, 1)
    num_tiles = pl.num_programs(0)

    @pl.when(i < num_tiles - 1)
    def _():
        diff_ref[...] = jnp.full((1, _DIFF_LANES), jnp.sum(rowsq), dtype=jnp.float32)

    @pl.when(i == num_tiles - 1)
    def _():
        r = i * tile_n + jax.lax.broadcasted_iota(jnp.int32, (tile_n, 1), 0)
        valid = (r < n_valid).astype(jnp.float32)
        diff_ref[...] = jnp.full((1, _DIFF_LANES), jnp.sum(valid * rowsq),
                                 dtype=jnp.float32)


# ----------------------------------------------------------------------------
# Wrapper
# ----------------------------------------------------------------------------
def _auto_tile_n(n_rows, n_embed):
    # Keep the (tile_n, n_embed) f32 dist + onehot intermediates (plus headroom)
    # ~<= 24 MiB so tiles fit v7x's 64 MiB (32 MiB scoped) VMEM; v5e/v6e have
    # 128 MiB so this is conservative there.
    cap_vmem = max(128, (24 * 1024 * 1024) // (12 * max(n_embed, 1)) // 128 * 128)
    # >= 2 grid steps when there is enough work so the ("parallel",) axis can be
    # sharded across both v7x TensorCores.
    cap_split = max(128, _round_up((n_rows + 1) // 2, 128))
    return max(128, min(1024, cap_vmem, cap_split))


@functools.partial(jax.jit, static_argnames=("tile_n", "use_bf16"))
def quantizer_forward(x, embed, tile_n=None, use_bf16=None):
    """x: (..., dim) float (channel-last); embed: (dim, n_embed) float.

    Returns (quantize, diff, embed_ind) matching Quantizer.forward in eval mode
    (the straight-through forward value equals the raw codebook lookup).
    tile_n=None auto-selects (multiple of 128, <=1024, VMEM- and megacore-aware).
    use_bf16=None auto-enables bf16 matmuls for dim >= 128; pass False for exact
    f32 parity with embed.T[ind] (bf16 can flip argmin on near-tied codes and
    rounds the quantize values).
    """
    dim, n_embed = embed.shape
    orig_shape = x.shape
    flat = x.reshape(-1, dim)
    n = flat.shape[0]

    if use_bf16 is None:
        use_bf16 = dim >= 128       # small dim is store/VPU bound: keep exact f32
    compute_dtype = jnp.bfloat16 if use_bf16 else jnp.float32

    if tile_n is None:
        tile_n = _auto_tile_n(n, n_embed)
    assert tile_n % 128 == 0, "tile_n must be a multiple of 128"

    n_pad = _round_up(max(n, 1), tile_n)
    if n_pad != n:
        flat = jnp.pad(flat, ((0, n_pad - n), (0, 0)))
    num_tiles = n_pad // tile_n

    # Hoisted once, outside the grid: codebook cast + 0.5*||e||^2.
    e32 = embed.astype(jnp.float32)
    e_op = embed.astype(compute_dtype)
    e2_half = 0.5 * jnp.sum(e32 * e32, axis=0, keepdims=True)        # (1, n_embed) f32

    codebook_spec = pl.BlockSpec((dim, n_embed), lambda i: (0, 0))   # resident
    e2h_spec = pl.BlockSpec((1, n_embed), lambda i: (0, 0))          # resident
    diff_spec = pl.BlockSpec((1, _DIFF_LANES), lambda i: (0, i))
    diff_shape = jax.ShapeDtypeStruct((1, num_tiles * _DIFF_LANES), jnp.float32)
    cparams = pltpu.CompilerParams(dimension_semantics=("parallel",))

    pack = (dim < _LANES) and (_LANES % dim == 0) and (dim % 8 == 0)
    if pack:
        g = _LANES // dim
        p = tile_n // g
        x_in = flat.reshape(n_pad // g, _LANES)      # same HBM bytes, lane-dense view
        kernel = functools.partial(_vq_kernel_packed, n_valid=n, tile_n=tile_n,
                                   dim=dim, n_embed=n_embed, g=g)
        q_pack, ind_row, diff_part = pl.pallas_call(
            kernel,
            out_shape=(
                jax.ShapeDtypeStruct((n_pad // g, _LANES), x.dtype),   # quantize (packed)
                jax.ShapeDtypeStruct((1, n_pad), jnp.int32),           # indices (chunk-major/tile)
                diff_shape,
            ),
            grid_spec=pltpu.PrefetchScalarGridSpec(
                num_scalar_prefetch=0,
                grid=(num_tiles,),
                in_specs=[
                    pl.BlockSpec((p, _LANES), lambda i: (i, 0)),       # packed x tile
                    codebook_spec,
                    e2h_spec,
                ],
                out_specs=[
                    pl.BlockSpec((p, _LANES), lambda i: (i, 0)),       # packed q tile
                    pl.BlockSpec((1, tile_n), lambda i: (0, i)),       # indices row
                    diff_spec,
                ],
            ),
            compiler_params=cparams,
        )(x_in, e_op, e2_half)
        q_flat = q_pack.reshape(n_pad, dim)
        # Undo the chunk-major per-tile index order: tile layout [c, r] -> logical r*g + c.
        ind_flat = ind_row.reshape(num_tiles, g, p).transpose(0, 2, 1).reshape(-1)
    else:
        kernel = functools.partial(_vq_kernel, n_valid=n, tile_n=tile_n,
                                   n_embed=n_embed)
        q_flat, ind_row, diff_part = pl.pallas_call(
            kernel,
            out_shape=(
                jax.ShapeDtypeStruct((n_pad, dim), x.dtype),
                jax.ShapeDtypeStruct((1, n_pad), jnp.int32),
                diff_shape,
            ),
            grid_spec=pltpu.PrefetchScalarGridSpec(
                num_scalar_prefetch=0,
                grid=(num_tiles,),
                in_specs=[
                    pl.BlockSpec((tile_n, dim), lambda i: (i, 0)),
                    codebook_spec,
                    e2h_spec,
                ],
                out_specs=[
                    pl.BlockSpec((tile_n, dim), lambda i: (i, 0)),
                    pl.BlockSpec((1, tile_n), lambda i: (0, i)),
                    diff_spec,
                ],
            ),
            compiler_params=cparams,
        )(flat, e_op, e2_half)
        ind_flat = ind_row[0]

    quantize = q_flat[:n].reshape(orig_shape)
    embed_ind = ind_flat[:n].reshape(orig_shape[:-1])
    total = jnp.sum(diff_part[0].reshape(num_tiles, _DIFF_LANES)[:, 0])
    # divide by n then dim: n*dim may not be exactly representable in f32
    diff = total / jnp.float32(n) / jnp.float32(dim)
    # Straight-through: forward value of `input + (quantize - input).detach()`
    # equals `quantize`; gradient plumbing is out of scope for this kernel.
    return quantize, diff, embed_ind


# ----------------------------------------------------------------------------
# Reference check
# ----------------------------------------------------------------------------
def _check(name, x, embed, q, d, ind, *, dist_tol=1e-3, q_atol=1e-5, d_rtol=1e-4):
    """Index optimality is checked with a distance tolerance (the kernel uses an
    algebraically-equivalent but not bit-identical distance); quantize/diff are
    checked for consistency with the returned indices."""
    dim = embed.shape[0]
    flat = x.reshape(-1, dim).astype(jnp.float32)
    e = embed.astype(jnp.float32)
    dist = (jnp.sum(flat * flat, axis=1, keepdims=True)
            - 2.0 * flat @ e
            + jnp.sum(e * e, axis=0, keepdims=True))
    best = jnp.min(dist, axis=1)
    ind_flat = ind.reshape(-1)
    chosen = jnp.take_along_axis(dist, ind_flat[:, None], axis=1)[:, 0]
    assert bool(jnp.all(chosen <= best + dist_tol)), (
        f"{name}: chosen code is not a distance minimizer")
    assert ind.shape == x.shape[:-1], f"{name}: index shape mismatch"

    q_lookup = e.T[ind_flat].reshape(x.shape)
    assert bool(jnp.allclose(q, q_lookup, atol=q_atol)), f"{name}: quantize mismatch"

    d_ref = jnp.mean((q_lookup - x.astype(jnp.float32)) ** 2)
    assert bool(jnp.allclose(d, d_ref, atol=1e-5, rtol=d_rtol)), (
        f"{name}: diff mismatch ({d} vs {d_ref})")


if __name__ == "__main__":
    key = jax.random.PRNGKey(0)
    k_x, k_x2, k_x3, k_e, k_e2 = jax.random.split(key, 5)

    # dim=32 exercises the lane-packed path (g = 128/dim = 4).
    DIM, N_EMBED = 32, 128
    embed = jax.random.normal(k_e, (DIM, N_EMBED), dtype=jnp.float32)  # torch.randn(dim, n_embed)
    x_big = jax.random.normal(k_x, (2, 16, 16, DIM), dtype=jnp.float32)   # 512 rows
    x_small = jax.random.normal(k_x2, (2, 4, 4, DIM), dtype=jnp.float32)  # 32 rows (padded path)

    # dim=160 exercises the unpacked fallback (128 % dim != 0) and the bf16 option.
    DIM2 = 160
    embed2 = jax.random.normal(k_e2, (DIM2, N_EMBED), dtype=jnp.float32)
    x_med = jax.random.normal(k_x3, (2, 8, 8, DIM2), dtype=jnp.float32)   # 128 rows

    cases = (
        # name,               x,       embed,  tile_n, use_bf16, check tolerances
        ("packed-multitile",  x_big,   embed,  None,   False,    {}),  # auto tile -> 2 parallel tiles
        ("packed-padded",     x_small, embed,  None,   False,    {}),  # row masking on last tile
        ("packed-onetile",    x_big,   embed,  512,    False,    {}),  # n == tile_n, single step
        ("unpacked-f32",      x_med,   embed2, None,   False,    {}),  # fallback path, exact parity
        ("unpacked-bf16",     x_med,   embed2, None,   None,           # auto -> bf16 dist + gather
         dict(dist_tol=1.0, q_atol=0.05, d_rtol=0.02)),
    )
    for name, xv, ev, tile, bf16, tol in cases:
        q, d, ind = quantizer_forward(xv, ev, tile_n=tile, use_bf16=bf16)
        jax.block_until_ready((q, d, ind))
        _check(name, xv, ev, q, d, ind, **tol)

    print("KERNEL_OK")
</pallas_src>

<mosaic_0001>
module attributes {stable_mosaic.version = 11 : i64} {
  func.func @_vq_kernel_packed(%arg0: i32, %arg1: memref<64x128xf32, #tpu.memory_space<vmem>>, %arg2: memref<32x128xf32, #tpu.memory_space<vmem>>, %arg3: memref<1x128xf32, #tpu.memory_space<vmem>>, %arg4: memref<64x128xf32, #tpu.memory_space<vmem>>, %arg5: memref<1x256xi32, #tpu.memory_space<vmem>>, %arg6: memref<1x128xf32, #tpu.memory_space<vmem>>) attributes {dimension_semantics = [#tpu.dimension_semantics<parallel>], iteration_bounds = array<i64: 2>, scalar_prefetch = 0 : i64, scratch_operands = 0 : i64, tpu.core_type = #tpu.core_type<tc>, window_params = [{transform_indices = @transform_0, window_bounds = array<i64: 64, 128>}, {pipeline_mode = #tpu.pipeline_mode<synchronous>, transform_indices = @transform_1, window_bounds = array<i64: 32, 128>}, {pipeline_mode = #tpu.pipeline_mode<synchronous>, transform_indices = @transform_2, window_bounds = array<i64: 1, 128>}, {transform_indices = @transform_3, window_bounds = array<i64: 64, 128>}, {transform_indices = @transform_4, window_bounds = array<i64: 1, 256>}, {transform_indices = @transform_5, window_bounds = array<i64: 1, 128>}]} {
    %c0 = arith.constant 0 : index
    %c0_0 = arith.constant 0 : index
    %0 = vector.load %arg2[%c0, %c0_0] : memref<32x128xf32, #tpu.memory_space<vmem>>, vector<32x128xf32>
    %c0_1 = arith.constant 0 : index
    %c0_2 = arith.constant 0 : index
    %1 = vector.load %arg3[%c0_1, %c0_2] : memref<1x128xf32, #tpu.memory_space<vmem>>, vector<1x128xf32>
    %c0_3 = arith.constant 0 : index
    %c0_4 = arith.constant 0 : index
    %2 = vector.load %arg1[%c0_3, %c0_4] : memref<64x128xf32, #tpu.memory_space<vmem>>, vector<64x128xf32>
    %3 = vector.extract_strided_slice %2 {offsets = [0, 0], sizes = [64, 32], strides = [1, 1]} : vector<64x128xf32> to vector<64x32xf32>
    %cst = arith.constant dense<0.000000e+00> : vector<64x128xf32>
    %4 = tpu.matmul %3, %0, %cst {dimension_numbers = #tpu.dot_dimension_numbers<[1], [0], [0], [1], [0, 0, 1, 1], [], []>} : vector<64x32xf32>, vector<32x128xf32>, vector<64x128xf32> -> vector<64x128xf32>
    %5 = vector.broadcast %1 : vector<1x128xf32> to vector<64x128xf32>
    %6 = arith.subf %5, %4 : vector<64x128xf32>
    %7 = tpu.reduce_index %6 {axis = 1 : i32, kind = #tpu.reduction_kind<arg_min>} : vector<64x128xf32> -> vector<64xi32>
    %8 = vector.shape_cast %7 : vector<64xi32> to vector<1x64xi32>
    %9 = tpu.iota {dimensions = array<i32: 1>} : vector<64x128xi32>
    %10 = vector.shape_cast %7 : vector<64xi32> to vector<64x1xi32>
    %11 = vector.broadcast %10 : vector<64x1xi32> to vector<64x128xi32>
    %12 = arith.cmpi eq, %9, %11 : vector<64x128xi32>
    %13 = arith.extui %12 : vector<64x128xi1> to vector<64x128xi32>
    %14 = arith.sitofp %13 : vector<64x128xi32> to vector<64x128xf32>
    %cst_5 = arith.constant dense<0.000000e+00> : vector<64x32xf32>
    %15 = tpu.matmul %14, %0, %cst_5 {dimension_numbers = #tpu.dot_dimension_numbers<[1], [1], [0], [0], [0, 0, 1, 0], [], []>} : vector<64x128xf32>, vector<32x128xf32>, vector<64x32xf32> -> vector<64x32xf32>
    %16 = arith.subf %15, %3 : vector<64x32xf32>
    %17 = arith.mulf %16, %16 : vector<64x32xf32>
    %cst_6 = arith.constant dense<0.000000e+00> : vector<64xf32>
    %18 = vector.multi_reduction <add>, %17, %cst_6 [1] : vector<64x32xf32> to vector<64xf32>
    %19 = vector.shape_cast %18 : vector<64xf32> to vector<64x1xf32>
    %20 = vector.extract_strided_slice %2 {offsets = [0, 32], sizes = [64, 32], strides = [1, 1]} : vector<64x128xf32> to vector<64x32xf32>
    %cst_7 = arith.constant dense<0.000000e+00> : vector<64x128xf32>
    %21 = tpu.matmul %20, %0, %cst_7 {dimension_numbers = #tpu.dot_dimension_numbers<[1], [0], [0], [1], [0, 0, 1, 1], [], []>} : vector<64x32xf32>, vector<32x128xf32>, vector<64x128xf32> -> vector<64x128xf32>
    %22 = vector.broadcast %1 : vector<1x128xf32> to vector<64x128xf32>
    %23 = arith.subf %22, %21 : vector<64x128xf32>
    %24 = tpu.reduce_index %23 {axis = 1 : i32, kind = #tpu.reduction_kind<arg_min>} : vector<64x128xf32> -> vector<64xi32>
    %25 = vector.shape_cast %24 : vector<64xi32> to vector<1x64xi32>
    %26 = tpu.iota {dimensions = array<i32: 1>} : vector<64x128xi32>
    %27 = vector.shape_cast %24 : vector<64xi32> to vector<64x1xi32>
    %28 = vector.broadcast %27 : vector<64x1xi32> to vector<64x128xi32>
    %29 = arith.cmpi eq, %26, %28 : vector<64x128xi32>
    %30 = arith.extui %29 : vector<64x128xi1> to vector<64x128xi32>
    %31 = arith.sitofp %30 : vector<64x128xi32> to vector<64x128xf32>
    %cst_8 = arith.constant dense<0.000000e+00> : vector<64x32xf32>
    %32 = tpu.matmul %31, %0, %cst_8 {dimension_numbers = #tpu.dot_dimension_numbers<[1], [1], [0], [0], [0, 0, 1, 0], [], []>} : vector<64x128xf32>, vector<32x128xf32>, vector<64x32xf32> -> vector<64x32xf32>
    %33 = arith.subf %32, %20 : vector<64x32xf32>
    %34 = arith.mulf %33, %33 : vector<64x32xf32>
    %cst_9 = arith.constant dense<0.000000e+00> : vector<64xf32>
    %35 = vector.multi_reduction <add>, %34, %cst_9 [1] : vector<64x32xf32> to vector<64xf32>
    %36 = vector.shape_cast %35 : vector<64xf32> to vector<64x1xf32>
    %37 = vector.extract_strided_slice %2 {offsets = [0, 64], sizes = [64, 32], strides = [1, 1]} : vector<64x128xf32> to vector<64x32xf32>
    %cst_10 = arith.constant dense<0.000000e+00> : vector<64x128xf32>
    %38 = tpu.matmul %37, %0, %cst_10 {dimension_numbers = #tpu.dot_dimension_numbers<[1], [0], [0], [1], [0, 0, 1, 1], [], []>} : vector<64x32xf32>, vector<32x128xf32>, vector<64x128xf32> -> vector<64x128xf32>
    %39 = vector.broadcast %1 : vector<1x128xf32> to vector<64x128xf32>
    %40 = arith.subf %39, %38 : vector<64x128xf32>
    %41 = tpu.reduce_index %40 {axis = 1 : i32, kind = #tpu.reduction_kind<arg_min>} : vector<64x128xf32> -> vector<64xi32>
    %42 = vector.shape_cast %41 : vector<64xi32> to vector<1x64xi32>
    %43 = tpu.iota {dimensions = array<i32: 1>} : vector<64x128xi32>
    %44 = vector.shape_cast %41 : vector<64xi32> to vector<64x1xi32>
    %45 = vector.broadcast %44 : vector<64x1xi32> to vector<64x128xi32>
    %46 = arith.cmpi eq, %43, %45 : vector<64x128xi32>
    %47 = arith.extui %46 : vector<64x128xi1> to vector<64x128xi32>
    %48 = arith.sitofp %47 : vector<64x128xi32> to vector<64x128xf32>
    %cst_11 = arith.constant dense<0.000000e+00> : vector<64x32xf32>
    %49 = tpu.matmul %48, %0, %cst_11 {dimension_numbers = #tpu.dot_dimension_numbers<[1], [1], [0], [0], [0, 0, 1, 0], [], []>} : vector<64x128xf32>, vector<32x128xf32>, vector<64x32xf32> -> vector<64x32xf32>
    %50 = arith.subf %49, %37 : vector<64x32xf32>
    %51 = arith.mulf %50, %50 : vector<64x32xf32>
    %cst_12 = arith.constant dense<0.000000e+00> : vector<64xf32>
    %52 = vector.multi_reduction <add>, %51, %cst_12 [1] : vector<64x32xf32> to vector<64xf32>
    %53 = vector.shape_cast %52 : vector<64xf32> to vector<64x1xf32>
    %54 = vector.extract_strided_slice %2 {offsets = [0, 96], sizes = [64, 32], strides = [1, 1]} : vector<64x128xf32> to vector<64x32xf32>
    %cst_13 = arith.constant dense<0.000000e+00> : vector<64x128xf32>
    %55 = tpu.matmul %54, %0, %cst_13 {dimension_numbers = #tpu.dot_dimension_numbers<[1], [0], [0], [1], [0, 0, 1, 1], [], []>} : vector<64x32xf32>, vector<32x128xf32>, vector<64x128xf32> -> vector<64x128xf32>
    %56 = vector.broadcast %1 : vector<1x128xf32> to vector<64x128xf32>
    %57 = arith.subf %56, %55 : vector<64x128xf32>
    %58 = tpu.reduce_index %57 {axis = 1 : i32, kind = #tpu.reduction_kind<arg_min>} : vector<64x128xf32> -> vector<64xi32>
    %59 = vector.shape_cast %58 : vector<64xi32> to vector<1x64xi32>
    %60 = tpu.iota {dimensions = array<i32: 1>} : vector<64x128xi32>
    %61 = vector.shape_cast %58 : vector<64xi32> to vector<64x1xi32>
    %62 = vector.broadcast %61 : vector<64x1xi32> to vector<64x128xi32>
    %63 = arith.cmpi eq, %60, %62 : vector<64x128xi32>
    %64 = arith.extui %63 : vector<64x128xi1> to vector<64x128xi32>
    %65 = arith.sitofp %64 : vector<64x128xi32> to vector<64x128xf32>
    %cst_14 = arith.constant dense<0.000000e+00> : vector<64x32xf32>
    %66 = tpu.matmul %65, %0, %cst_14 {dimension_numbers = #tpu.dot_dimension_numbers<[1], [1], [0], [0], [0, 0, 1, 0], [], []>} : vector<64x128xf32>, vector<32x128xf32>, vector<64x32xf32> -> vector<64x32xf32>
    %67 = arith.subf %66, %54 : vector<64x32xf32>
    %68 = arith.mulf %67, %67 : vector<64x32xf32>
    %cst_15 = arith.constant dense<0.000000e+00> : vector<64xf32>
    %69 = vector.multi_reduction <add>, %68, %cst_15 [1] : vector<64x32xf32> to vector<64xf32>
    %70 = vector.shape_cast %69 : vector<64xf32> to vector<64x1xf32>
    %71 = tpu.concatenate %15, %32, %49, %66 in 1 : vector<64x32xf32>, vector<64x32xf32>, vector<64x32xf32>, vector<64x32xf32> -> vector<64x128xf32>
    %c0_16 = arith.constant 0 : index
    %c0_17 = arith.constant 0 : index
    %72 = vector.load %arg4[%c0_16, %c0_17] : memref<64x128xf32, #tpu.memory_space<vmem>>, vector<64x128xf32>
    tpu.vector_store %arg4[%c0_16, %c0_17], %71 {strides = array<i32>} : memref<64x128xf32, #tpu.memory_space<vmem>>, vector<64x128xf32>,
    %73 = tpu.concatenate %8, %25, %42, %59 in 1 : vector<1x64xi32>, vector<1x64xi32>, vector<1x64xi32>, vector<1x64xi32> -> vector<1x256xi32>
    %c0_18 = arith.constant 0 : index
    %c0_19 = arith.constant 0 : index
    %74 = vector.load %arg5[%c0_18, %c0_19] : memref<1x256xi32, #tpu.memory_space<vmem>>, vector<1x256xi32>
    tpu.vector_store %arg5[%c0_18, %c0_19], %73 {strides = array<i32>} : memref<1x256xi32, #tpu.memory_space<vmem>>, vector<1x256xi32>,
    %c1_i32 = arith.constant 1 : i32
    %75 = arith.cmpi slt, %arg0, %c1_i32 : i32
    %76 = arith.extui %75 : i1 to i32
    %c0_i32 = arith.constant 0 : i32
    %77 = arith.cmpi ne, %76, %c0_i32 : i32
    scf.if %77 {
      %81 = vector.shape_cast %19 : vector<64x1xf32> to vector<1x64x1xf32>
      %cst_22 = arith.constant dense<0.000000e+00> : vector<1xf32>
      %82 = vector.multi_reduction <add>, %81, %cst_22 [1, 2] : vector<1x64x1xf32> to vector<1xf32>
      %83 = vector.shape_cast %82 : vector<1xf32> to vector<1x1x1xf32>
      %84 = vector.extract %83[0, 0, 0] : f32 from vector<1x1x1xf32>
      %cst_23 = arith.constant 0.000000e+00 : f32
      %85 = arith.addf %cst_23, %84 : f32
      %86 = vector.shape_cast %36 : vector<64x1xf32> to vector<1x64x1xf32>
      %cst_24 = arith.constant dense<0.000000e+00> : vector<1xf32>
      %87 = vector.multi_reduction <add>, %86, %cst_24 [1, 2] : vector<1x64x1xf32> to vector<1xf32>
      %88 = vector.shape_cast %87 : vector<1xf32> to vector<1x1x1xf32>
      %89 = vector.extract %88[0, 0, 0] : f32 from vector<1x1x1xf32>
      %90 = arith.addf %85, %89 : f32
      %91 = vector.shape_cast %53 : vector<64x1xf32> to vector<1x64x1xf32>
      %cst_25 = arith.constant dense<0.000000e+00> : vector<1xf32>
      %92 = vector.multi_reduction <add>, %91, %cst_25 [1, 2] : vector<1x64x1xf32> to vector<1xf32>
      %93 = vector.shape_cast %92 : vector<1xf32> to vector<1x1x1xf32>
      %94 = vector.extract %93[0, 0, 0] : f32 from vector<1x1x1xf32>
      %95 = arith.addf %90, %94 : f32
      %96 = vector.shape_cast %70 : vector<64x1xf32> to vector<1x64x1xf32>
      %cst_26 = arith.constant dense<0.000000e+00> : vector<1xf32>
      %97 = vector.multi_reduction <add>, %96, %cst_26 [1, 2] : vector<1x64x1xf32> to vector<1xf32>
      %98 = vector.shape_cast %97 : vector<1xf32> to vector<1x1x1xf32>
      %99 = vector.extract %98[0, 0, 0] : f32 from vector<1x1x1xf32>
      %100 = arith.addf %95, %99 : f32
      %101 = vector.broadcast %100 : f32 to vector<1x128xf32>
      %c0_27 = arith.constant 0 : index
      %c0_28 = arith.constant 0 : index
      %102 = vector.load %arg6[%c0_27, %c0_28] : memref<1x128xf32, #tpu.memory_space<vmem>>, vector<1x128xf32>
      tpu.vector_store %arg6[%c0_27, %c0_28], %101 {strides = array<i32>} : memref<1x128xf32, #tpu.memory_space<vmem>>, vector<1x128xf32>,
    } else {
    }
    %c1_i32_20 = arith.constant 1 : i32
    %78 = arith.cmpi eq, %arg0, %c1_i32_20 : i32
    %79 = arith.extui %78 : i1 to i32
    %c0_i32_21 = arith.constant 0 : i32
    %80 = arith.cmpi ne, %79, %c0_i32_21 : i32
    scf.if %80 {
      %c256_i32 = arith.constant 256 : i32
      %81 = arith.muli %arg0, %c256_i32 : i32
      %82 = tpu.iota {dimensions = array<i32: 0>} : vector<64x1xi32>
      %c4_i32 = arith.constant 4 : i32
      %83 = vector.broadcast %c4_i32 : i32 to vector<64x1xi32>
      %84 = arith.muli %82, %83 : vector<64x1xi32>
      %85 = vector.broadcast %81 : i32 to vector<64x1xi32>
      %86 = arith.addi %85, %84 : vector<64x1xi32>
      %c0_i32_22 = arith.constant 0 : i32
      %87 = vector.broadcast %c0_i32_22 : i32 to vector<64x1xi32>
      %88 = arith.addi %86, %87 : vector<64x1xi32>
      %c512_i32 = arith.constant 512 : i32
      %89 = vector.broadcast %c512_i32 : i32 to vector<64x1xi32>
      %90 = arith.cmpi slt, %88, %89 : vector<64x1xi32>
      %91 = arith.extui %90 : vector<64x1xi1> to vector<64x1xi32>
      %92 = arith.sitofp %91 : vector<64x1xi32> to vector<64x1xf32>
      %93 = arith.mulf %92, %19 : vector<64x1xf32>
      %94 = vector.shape_cast %93 : vector<64x1xf32> to vector<1x64x1xf32>
      %cst_23 = arith.constant dense<0.000000e+00> : vector<1xf32>
      %95 = vector.multi_reduction <add>, %94, %cst_23 [1, 2] : vector<1x64x1xf32> to vector<1xf32>
      %96 = vector.shape_cast %95 : vector<1xf32> to vector<1x1x1xf32>
      %97 = vector.extract %96[0, 0, 0] : f32 from vector<1x1x1xf32>
      %cst_24 = arith.constant 0.000000e+00 : f32
      %98 = arith.addf %cst_24, %97 : f32
      %c4_i32_25 = arith.constant 4 : i32
      %99 = vector.broadcast %c4_i32_25 : i32 to vector<64x1xi32>
      %100 = arith.muli %82, %99 : vector<64x1xi32>
      %101 = vector.broadcast %81 : i32 to vector<64x1xi32>
      %102 = arith.addi %101, %100 : vector<64x1xi32>
      %c1_i32_26 = arith.constant 1 : i32
      %103 = vector.broadcast %c1_i32_26 : i32 to vector<64x1xi32>
      %104 = arith.addi %102, %103 : vector<64x1xi32>
      %c512_i32_27 = arith.constant 512 : i32
      %105 = vector.broadcast %c512_i32_27 : i32 to vector<64x1xi32>
      %106 = arith.cmpi slt, %104, %105 : vector<64x1xi32>
      %107 = arith.extui %106 : vector<64x1xi1> to vector<64x1xi32>
      %108 = arith.sitofp %107 : vector<64x1xi32> to vector<64x1xf32>
      %109 = arith.mulf %108, %36 : vector<64x1xf32>
      %110 = vector.shape_cast %109 : vector<64x1xf32> to vector<1x64x1xf32>
      %cst_28 = arith.constant dense<0.000000e+00> : vector<1xf32>
      %111 = vector.multi_reduction <add>, %110, %cst_28 [1, 2] : vector<1x64x1xf32> to vector<1xf32>
      %112 = vector.shape_cast %111 : vector<1xf32> to vector<1x1x1xf32>
      %113 = vector.extract %112[0, 0, 0] : f32 from vector<1x1x1xf32>
      %114 = arith.addf %98, %113 : f32
      %c4_i32_29 = arith.constant 4 : i32
      %115 = vector.broadcast %c4_i32_29 : i32 to vector<64x1xi32>
      %116 = arith.muli %82, %115 : vector<64x1xi32>
      %117 = vector.broadcast %81 : i32 to vector<64x1xi32>
      %118 = arith.addi %117, %116 : vector<64x1xi32>
      %c2_i32 = arith.constant 2 : i32
      %119 = vector.broadcast %c2_i32 : i32 to vector<64x1xi32>
      %120 = arith.addi %118, %119 : vector<64x1xi32>
      %c512_i32_30 = arith.constant 512 : i32
      %121 = vector.broadcast %c512_i32_30 : i32 to vector<64x1xi32>
      %122 = arith.cmpi slt, %120, %121 : vector<64x1xi32>
      %123 = arith.extui %122 : vector<64x1xi1> to vector<64x1xi32>
      %124 = arith.sitofp %123 : vector<64x1xi32> to vector<64x1xf32>
      %125 = arith.mulf %124, %53 : vector<64x1xf32>
      %126 = vector.shape_cast %125 : vector<64x1xf32> to vector<1x64x1xf32>
      %cst_31 = arith.constant dense<0.000000e+00> : vector<1xf32>
      %127 = vector.multi_reduction <add>, %126, %cst_31 [1, 2] : vector<1x64x1xf32> to vector<1xf32>
      %128 = vector.shape_cast %127 : vector<1xf32> to vector<1x1x1xf32>
      %129 = vector.extract %128[0, 0, 0] : f32 from vector<1x1x1xf32>
      %130 = arith.addf %114, %129 : f32
      %c4_i32_32 = arith.constant 4 : i32
      %131 = vector.broadcast %c4_i32_32 : i32 to vector<64x1xi32>
      %132 = arith.muli %82, %131 : vector<64x1xi32>
      %133 = vector.broadcast %81 : i32 to vector<64x1xi32>
      %134 = arith.addi %133, %132 : vector<64x1xi32>
      %c3_i32 = arith.constant 3 : i32
      %135 = vector.broadcast %c3_i32 : i32 to vector<64x1xi32>
      %136 = arith.addi %134, %135 : vector<64x1xi32>
      %c512_i32_33 = arith.constant 512 : i32
      %137 = vector.broadcast %c512_i32_33 : i32 to vector<64x1xi32>
      %138 = arith.cmpi slt, %136, %137 : vector<64x1xi32>
      %139 = arith.extui %138 : vector<64x1xi1> to vector<64x1xi32>
      %140 = arith.sitofp %139 : vector<64x1xi32> to vector<64x1xf32>
      %141 = arith.mulf %140, %70 : vector<64x1xf32>
      %142 = vector.shape_cast %141 : vector<64x1xf32> to vector<1x64x1xf32>
      %cst_34 = arith.constant dense<0.000000e+00> : vector<1xf32>
      %143 = vector.multi_reduction <add>, %142, %cst_34 [1, 2] : vector<1x64x1xf32> to vector<1xf32>
      %144 = vector.shape_cast %143 : vector<1xf32> to vector<1x1x1xf32>
      %145 = vector.extract %144[0, 0, 0] : f32 from vector<1x1x1xf32>
      %146 = arith.addf %130, %145 : f32
      %147 = vector.broadcast %146 : f32 to vector<1x128xf32>
      %c0_35 = arith.constant 0 : index
      %c0_36 = arith.constant 0 : index
      %148 = vector.load %arg6[%c0_35, %c0_36] : memref<1x128xf32, #tpu.memory_space<vmem>>, vector<1x128xf32>
      tpu.vector_store %arg6[%c0_35, %c0_36], %147 {strides = array<i32>} : memref<1x128xf32, #tpu.memory_space<vmem>>, vector<1x128xf32>,
    } else {
    }
    return
  }
  func.func @transform_0(%arg0: i32) -> (i32, i32) {
    %c0_i32 = arith.constant 0 : i32
    %c0_i32_0 = arith.constant 0 : i32
    return %arg0, %c0_i32 : i32, i32
  }
  func.func @transform_1(%arg0: i32) -> (i32, i32) {
    %c0_i32 = arith.constant 0 : i32
    %c0_i32_0 = arith.constant 0 : i32
    %c0_i32_1 = arith.constant 0 : i32
    return %c0_i32, %c0_i32_0 : i32, i32
  }
  func.func @transform_2(%arg0: i32) -> (i32, i32) {
    %c0_i32 = arith.constant 0 : i32
    %c0_i32_0 = arith.constant 0 : i32
    %c0_i32_1 = arith.constant 0 : i32
    return %c0_i32, %c0_i32_0 : i32, i32
  }
  func.func @transform_3(%arg0: i32) -> (i32, i32) {
    %c0_i32 = arith.constant 0 : i32
    %c0_i32_0 = arith.constant 0 : i32
    return %arg0, %c0_i32 : i32, i32
  }
  func.func @transform_4(%arg0: i32) -> (i32, i32) {
    %c0_i32 = arith.constant 0 : i32
    %c0_i32_0 = arith.constant 0 : i32
    return %c0_i32, %arg0 : i32, i32
  }
  func.func @transform_5(%arg0: i32) -> (i32, i32) {
    %c0_i32 = arith.constant 0 : i32
    %c0_i32_0 = arith.constant 0 : i32
    return %c0_i32, %arg0 : i32, i32
  }
}

</mosaic_0001>

<llo_original>
// kernel: quantizer_forward.1
$region0: #{quantizer_forward.1}
  #allocation0 [shape = 'u32[]', space=smem, size = 0x4, offset = 0x4, fixed_abs, tag = 'smem constant byte address 0x4 - core index']
  #allocation1 [shape = 'u32[72,128]{1,0:T(1,128)}', space=vmem, size = 0x9000, scoped, tag = 'internal scratch']
  %s0 = inlined_call_operand.vmem [shape: f32[128,128], index: 0, kind: input, shape index: {}]
  %s1 = inlined_call_operand.vmem [shape: f32[32,128], index: 1, kind: input, shape index: {}]
  %s2 = inlined_call_operand.vmem [shape: f32[1,128], index: 2, kind: input, shape index: {}]
  %s3 = inlined_call_operand.vmem [shape: f32[128,128], index: 3, kind: output, shape index: {0}]
  %s4 = inlined_call_operand.vmem [shape: s32[1,512], index: 4, kind: output, shape index: {1}]
  %s5 = inlined_call_operand.vmem [shape: f32[1,256], index: 5, kind: output, shape index: {2}]
  %6 = xla_tuple %s3, %s4, %s5
  %s7 = sld [smem:[#allocation0]]
  $region69: #{quantizer_forward.1} parent=0
    _
  %s9 = ssub.s32 1, %s7
  %s10 = scalar_select 0, %s9, %s7
  loop: start=0, step=1, limit=4
  $region2: #{quantizer_forward.1} parent=0 // loop_pre_header
    _
  $region3: #{quantizer_forward.1} parent=0 // loop_header
    %s12 = sphi 0, %s16
    %p13 = scmp.ge.s32.totalorder %s12, 4
    %s22 = sphi 0, %s24
    %s25 = sphi 0, %s22
    %s26 = sphi 0, %s25
    %s42 = sphi 0, %s26
    %s46 = sphi 0, %s46
    %s48 = sphi 0, %s46
    %s49 = sphi 0, %s48
    %s63 = sphi 0, %s49
    %s67 = sphi 0, %s67
    %s69 = sphi 0, %s67
    %s70 = sphi 0, %s69
    %s84 = sphi 0, %s70
    %s90 = sphi 0, %s92
    %s93 = sphi 0, %s90
    %s94 = sphi 0, %s93
    %s110 = sphi 0, %s94
    %s116 = sphi 0, %s118
    %s119 = sphi 0, %s116
    %s120 = sphi 0, %s119
    %s136 = sphi 0, %s120
    %s142 = sphi 0, %s144
    %s145 = sphi 0, %s142
    %s146 = sphi 0, %s145
    %s162 = sphi 0, %s146
  $region4: #{quantizer_forward.1} parent=0 // loop_header_branch
    %15 = sbr.rel (%p13) target = $region8
  $region5: #{quantizer_forward.1} parent=0 // loop_body
    %s17 = ssub.s32 %s12, 1
    %s18 = ssub.s32 %s12, 2
    %s19 = sadd.s32 %s12, 1
    %s20 = ssub.s32 %s12, %s19
    %p21 = scmp.eq.s32.totalorder %s20, 0
    %s23 = sadd.s32 %s22, 1
    %s24 = scalar_select %p21, %s22, %s23
    %p27 = pneg %p21
    %p28 = scmp.eq.s32.totalorder %s12, 1
    %p29 = por %p27, %p28
    %p30 = scmp.ne.s32.totalorder %s22, %s25
    %p31 = scmp.eq.s32.totalorder %s12, 0
    %p32 = por %p30, %p31
    %p33 = scmp.ne.s32.totalorder %s22, %s25
    %p34 = scmp.eq.s32.totalorder %s17, 1
    %p35 = por %p33, %p34
    %p36 = scmp.ne.s32.totalorder %s25, %s26
    %p37 = scmp.eq.s32.totalorder %s17, 0
    %p38 = por %p36, %p37
    %p39 = scmp.ne.s32.totalorder %s25, %s26
    %p40 = scmp.eq.s32.totalorder %s18, 1
    %p41 = por %p39, %p40
    %p43 = scmp.ne.s32.totalorder %s26, %s42
    %p44 = scmp.eq.s32.totalorder %s18, 0
    %p45 = por %p43, %p44
    %s47 = sadd.s32 %s46, 1
    %p50 = scmp.eq.s32.totalorder %s12, 1
    %p51 = scmp.ne.s32.totalorder %s46, %s48
    %p52 = scmp.eq.s32.totalorder %s12, 0
    %p53 = por %p51, %p52
    %p54 = scmp.ne.s32.totalorder %s46, %s48
    %p55 = scmp.eq.s32.totalorder %s17, 1
    %p56 = por %p54, %p55
    %p57 = scmp.ne.s32.totalorder %s48, %s49
    %p58 = scmp.eq.s32.totalorder %s17, 0
    %p59 = por %p57, %p58
    %p60 = scmp.ne.s32.totalorder %s48, %s49
    %p61 = scmp.eq.s32.totalorder %s18, 1
    %p62 = por %p60, %p61
    %p64 = scmp.ne.s32.totalorder %s49, %s63
    %p65 = scmp.eq.s32.totalorder %s18, 0
    %p66 = por %p64, %p65
    %s68 = sadd.s32 %s67, 1
    %p71 = scmp.eq.s32.totalorder %s12, 1
    %p72 = scmp.ne.s32.totalorder %s67, %s69
    %p73 = scmp.eq.s32.totalorder %s12, 0
    %p74 = por %p72, %p73
    %p75 = scmp.ne.s32.totalorder %s67, %s69
    %p76 = scmp.eq.s32.totalorder %s17, 1
    %p77 = por %p75, %p76
    %p78 = scmp.ne.s32.totalorder %s69, %s70
    %p79 = scmp.eq.s32.totalorder %s17, 0
    %p80 = por %p78, %p79
    %p81 = scmp.ne.s32.totalorder %s69, %s70
    %p82 = scmp.eq.s32.totalorder %s18, 1
    %p83 = por %p81, %p82
    %p85 = scmp.ne.s32.totalorder %s70, %s84
    %p86 = scmp.eq.s32.totalorder %s18, 0
    %p87 = por %p85, %p86
    %s88 = ssub.s32 %s12, %s19
    %p89 = scmp.eq.s32.totalorder %s88, 0
    %s91 = sadd.s32 %s90, 1
    %s92 = scalar_select %p89, %s90, %s91
    %p95 = pneg %p89
    %p96 = scmp.eq.s32.totalorder %s12, 1
    %p97 = por %p95, %p96
    %p98 = scmp.ne.s32.totalorder %s90, %s93
    %p99 = scmp.eq.s32.totalorder %s12, 0
    %p100 = por %p98, %p99
    %p101 = scmp.ne.s32.totalorder %s90, %s93
    %p102 = scmp.eq.s32.totalorder %s17, 1
    %p103 = por %p101, %p102
    %p104 = scmp.ne.s32.totalorder %s93, %s94
    %p105 = scmp.eq.s32.totalorder %s17, 0
    %p106 = por %p104, %p105
    %p107 = scmp.ne.s32.totalorder %s93, %s94
    %p108 = scmp.eq.s32.totalorder %s18, 1
    %p109 = por %p107, %p108
    %p111 = scmp.ne.s32.totalorder %s94, %s110
    %p112 = scmp.eq.s32.totalorder %s18, 0
    %p113 = por %p111, %p112
    %s114 = ssub.s32 %s12, %s19
    %p115 = scmp.eq.s32.totalorder %s114, 0
    %s117 = sadd.s32 %s116, 1
    %s118 = scalar_select %p115, %s116, %s117
    %p121 = pneg %p115
    %p122 = scmp.eq.s32.totalorder %s12, 1
    %p123 = por %p121, %p122
    %p124 = scmp.ne.s32.totalorder %s116, %s119
    %p125 = scmp.eq.s32.totalorder %s12, 0
    %p126 = por %p124, %p125
    %p127 = scmp.ne.s32.totalorder %s116, %s119
    %p128 = scmp.eq.s32.totalorder %s17, 1
    %p129 = por %p127, %p128
    %p130 = scmp.ne.s32.totalorder %s119, %s120
    %p131 = scmp.eq.s32.totalorder %s17, 0
    %p132 = por %p130, %p131
    %p133 = scmp.ne.s32.totalorder %s119, %s120
    %p134 = scmp.eq.s32.totalorder %s18, 1
    %p135 = por %p133, %p134
    %p137 = scmp.ne.s32.totalorder %s120, %s136
    %p138 = scmp.eq.s32.totalorder %s18, 0
    %p139 = por %p137, %p138
    %s140 = ssub.s32 %s12, %s19
    %p141 = scmp.eq.s32.totalorder %s140, 0
    %s143 = sadd.s32 %s142, 1
    %s144 = scalar_select %p141, %s142, %s143
    %p147 = pneg %p141
    %p148 = scmp.eq.s32.totalorder %s12, 1
    %p149 = por %p147, %p148
    %p150 = scmp.ne.s32.totalorder %s142, %s145
    %p151 = scmp.eq.s32.totalorder %s12, 0
    %p152 = por %p150, %p151
    %p153 = scmp.ne.s32.totalorder %s142, %s145
    %p154 = scmp.eq.s32.totalorder %s17, 1
    %p155 = por %p153, %p154
    %p156 = scmp.ne.s32.totalorder %s145, %s146
    %p157 = scmp.eq.s32.totalorder %s17, 0
    %p158 = por %p156, %p157
    %p159 = scmp.ne.s32.totalorder %s145, %s146
    %p160 = scmp.eq.s32.totalorder %s18, 1
    %p161 = por %p159, %p160
    %p163 = scmp.ne.s32.totalorder %s146, %s162
    %p164 = scmp.eq.s32.totalorder %s18, 0
    %p165 = por %p163, %p164
    %p166 = scmp.le.s32.totalorder 1, %s12
    %p167 = scmp.lt.s32.totalorder %s12, 3
    %p168 = pnand %p166, %p167
    %p169 = pneg %p168
    // Predicated region
    $region9: #{quantizer_forward.1} parent=5 // pred_check
      _
    $region10: #{quantizer_forward.1} parent=5 // pred_check_branch
      %171 = sbr.rel (%p168) target = $region12
    $region11: #{quantizer_forward.1} parent=5 // pred_region
      %s172 = ssub.s32 %s12, 1
      // Predicated region
      $region13: #{quantizer_forward.1} parent=11 // pred_check
        %p173 = pneg %p59
      $region14: #{quantizer_forward.1} parent=11 // pred_check_branch
        %175 = sbr.rel (%p173) target = $region16
      $region15: #{quantizer_forward.1} parent=11 // pred_region
        _
      $region16: #{quantizer_forward.1} parent=11 // pred_fallthru
        _
      // Predicated region
      $region17: #{quantizer_forward.1} parent=11 // pred_check
        %p176 = pneg %p80
      $region18: #{quantizer_forward.1} parent=11 // pred_check_branch
        %178 = sbr.rel (%p176) target = $region20
      $region19: #{quantizer_forward.1} parent=11 // pred_region
        _
      $region20: #{quantizer_forward.1} parent=11 // pred_fallthru
        _
    $region12: #{quantizer_forward.1} parent=5 // pred_fallthru
      _
    %p179 = scmp.lt.s32.totalorder %s12, 2
    // Predicated region
    $region21: #{quantizer_forward.1} parent=5 // pred_check
      %p180 = pneg %p179
    $region22: #{quantizer_forward.1} parent=5 // pred_check_branch
      %182 = sbr.rel (%p180) target = $region24
    $region23: #{quantizer_forward.1} parent=5 // pred_region
      // Predicated region
      $region25: #{quantizer_forward.1} parent=23 // pred_check
        %p183 = pneg %p32
      $region26: #{quantizer_forward.1} parent=23 // pred_check_branch
        %185 = sbr.rel (%p183) target = $region28
      $region27: #{quantizer_forward.1} parent=23 // pred_region
        %s186 = smul.u32 8, %s12
        %p187 = scmp.lt.s32.totalorder %s186, 15
        %s188 = scalar_select %p187, %s186, 15
        %s189 = smul.addr %s188, 8
        %s190 = scalar_lea.vmem %s0, %s189
        %s191 = smul.u32 8, %s12
      $region28: #{quantizer_forward.1} parent=23 // pred_fallthru
        _
    $region24: #{quantizer_forward.1} parent=5 // pred_fallthru
      _
    %p192 = scmp.le.s32.totalorder 1, %s12
    %p193 = scmp.lt.s32.totalorder %s12, 3
    %p194 = pnand %p192, %p193
    %p195 = pneg %p194
    // Predicated region
    $region29: #{quantizer_forward.1} parent=5 // pred_check
      _
    $region30: #{quantizer_forward.1} parent=5 // pred_check_branch
      %197 = sbr.rel (%p194) target = $region32
    $region31: #{quantizer_forward.1} parent=5 // pred_region
      %s198 = ssub.s32 %s12, 1
      %s199 = smul.u32 8, %s17
      %p200 = scmp.lt.s32.totalorder %s199, 15
      %s201 = scalar_select %p200, %s199, 15
      %s202 = smul.addr %s201, 8
      %s203 = scalar_lea.vmem %s0, %s202
      %p204 = pneg %p38
      %p205 = pneg %p35
      %p206 = pneg %p59
      %p207 = pneg %p56
      %p208 = pneg %p80
      %p209 = pneg %p77
      %p210 = pneg %p106
      %p211 = pneg %p103
      %s212 = smul.u32 8, %s17
      %p213 = scmp.lt.s32.totalorder %s212, 15
      %s214 = scalar_select %p213, %s212, 15
      %s215 = smul.addr %s214, 8
      %s216 = scalar_lea.vmem %s3, %s215
      %p217 = pneg %p132
      %p218 = pneg %p129
      %s219 = smul.u32 2, %s17
      %p220 = scmp.lt.s32.totalorder %s219, 3
      %s221 = scalar_select %p220, %s219, 3
      %s222 = scalar_lea.vmem %s4, %s221
      %p223 = pneg %p158
      %p224 = pneg %p155
      %p225 = scmp.lt.s32.totalorder %s17, 1
      %s226 = scalar_select %p225, %s17, 1
      %s227 = scalar_lea.vmem %s5, %s226
      %s228 = smul.u32 8, %s17
      %p229 = scmp.lt.s32.totalorder %s228, 15
      %s230 = scalar_select %p229, %s228, 15
      %s231 = smul.addr %s230, 8
      %s232 = scalar_lea.vmem %s0, %s231
      %s233 = smul.u32 8, %s17
      %s234 = smul.u32 8, %s17
      %p235 = scmp.lt.s32.totalorder %s234, 15
      %s236 = scalar_select %p235, %s234, 15
      %s237 = smul.addr %s236, 8
      %s238 = scalar_lea.vmem %s3, %s237
      %s239 = smul.u32 8, %s17
      %s240 = smul.u32 2, %s17
      %p241 = scmp.lt.s32.totalorder %s240, 3
      %s242 = scalar_select %p241, %s240, 3
      %s243 = scalar_lea.vmem %s4, %s242
      %s244 = smul.u32 2, %s17
      %p245 = scmp.lt.s32.totalorder %s17, 1
      %s246 = scalar_select %p245, %s17, 1
      %s247 = scalar_lea.vmem %s5, %s246
      %v248 = vld [vmem:[%s1] sm:$0xff]
      %v249 = vld [vmem:[%s1 + $0x8] sm:$0xff]
      %v250 = vld [vmem:[%s1 + $0x10] sm:$0xff]
      %v251 = vld [vmem:[%s1 + $0x18] sm:$0xff]
      %v252 = vld [vmem:[%s2] sm:$0x1]
      %v253 = vld [vmem:[%s232] sm:$0xff]
      %v254 = vld [vmem:[%s232 + $0x8] sm:$0xff]
      %v255 = vld [vmem:[%s232 + $0x10] sm:$0xff]
      %v256 = vld [vmem:[%s232 + $0x18] sm:$0xff]
      %v257 = vld [vmem:[%s232 + $0x20] sm:$0xff]
      %v258 = vld [vmem:[%s232 + $0x28] sm:$0xff]
      %v259 = vld [vmem:[%s232 + $0x30] sm:$0xff]
      %v260 = vld [vmem:[%s232 + $0x38] sm:$0xff]
      %vm261 = vcmask 261120
      %v263 = vsel %vm261, %v253, 0
      %v266 = vsel %vm261, %v254, 0
      %v269 = vsel %vm261, %v255, 0
      %v272 = vsel %vm261, %v256, 0
      %v275 = vsel %vm261, %v257, 0
      %v278 = vsel %vm261, %v258, 0
      %v281 = vsel %vm261, %v259, 0
      %v284 = vsel %vm261, %v260, 0
      %286 = vmatpush.msra.mxu0 0.0
      %287 = vmatpush.msra.mxu0 0.0
      %288 = vmatpush.msra.mxu0 0.0
      %289 = vmatpush.msra.mxu0 0.0
      %290 = vmatpush.msra.mxu0 0.0
      %291 = vmatpush.msra.mxu0 0.0
      %292 = vmatpush.msra.mxu0 0.0
      %293 = vmatpush.msra.mxu0 0.0
      %294 = vmatpush.msra.mxu0 0.0
      %295 = vmatpush.msra.mxu0 0.0
      %296 = vmatpush.msra.mxu0 0.0
      %297 = vmatpush.msra.mxu0 0.0
      %298 = vmatpush.msra.mxu0 %v251
      %299 = vmatpush.msra.mxu0 %v250
      %300 = vmatpush.msra.mxu0 %v249
      %301 = vmatpush.msra.mxu0 %v248
      %302 = vmatmul.f32.gmra.mxu0 %v263
      %v303 = vpop.f32.mrf.mxu0
      %v304 = vadd.f32 0.0, %v303
      %305 = vmatmul.f32.gmra.mxu0 %v266
      %v306 = vpop.f32.mrf.mxu0
      %v307 = vadd.f32 0.0, %v306
      %308 = vmatmul.f32.gmra.mxu0 %v269
      %v309 = vpop.f32.mrf.mxu0
      %v310 = vadd.f32 0.0, %v309
      %311 = vmatmul.f32.gmra.mxu0 %v272
      %v312 = vpop.f32.mrf.mxu0
      %v313 = vadd.f32 0.0, %v312
      %314 = vmatmul.f32.gmra.mxu0 %v275
      %v315 = vpop.f32.mrf.mxu0
      %v316 = vadd.f32 0.0, %v315
      %317 = vmatmul.f32.gmra.mxu0 %v278
      %v318 = vpop.f32.mrf.mxu0
      %v319 = vadd.f32 0.0, %v318
      %320 = vmatmul.f32.gmra.mxu0 %v281
      %v321 = vpop.f32.mrf.mxu0
      %v322 = vadd.f32 0.0, %v321
      %323 = vmatmul.f32.gmra.mxu0 %v284
      %v324 = vpop.f32.mrf.mxu0
      %v325 = vadd.f32 0.0, %v324
      %326 = vdwg.mxu0
      %v328 = vperm.slane %v252, 0
      %v330 = vsub.f32 %v328, %v304
      %v331 = vsub.f32 %v328, %v307
      %v332 = vsub.f32 %v328, %v310
      %v333 = vsub.f32 %v328, %v313
      %v334 = vsub.f32 %v328, %v316
      %v335 = vsub.f32 %v328, %v319
      %v336 = vsub.f32 %v328, %v322
      %v337 = vsub.f32 %v328, %v325
      %338 = vmin.index.xlane.f32.xlu0 %v330
      %v339 = vpop.xlane.xlu0 %338
      %340 = vmin.index.xlane.f32.xlu0 %v331
      %v341 = vpop.xlane.xlu0 %340
      %342 = vmin.index.xlane.f32.xlu0 %v332
      %v343 = vpop.xlane.xlu0 %342
      %344 = vmin.index.xlane.f32.xlu0 %v333
      %v345 = vpop.xlane.xlu0 %344
      %346 = vmin.index.xlane.f32.xlu0 %v334
      %v347 = vpop.xlane.xlu0 %346
      %348 = vmin.index.xlane.f32.xlu0 %v335
      %v349 = vpop.xlane.xlu0 %348
      %350 = vmin.index.xlane.f32.xlu0 %v336
      %v351 = vpop.xlane.xlu0 %350
      %352 = vmin.index.xlane.f32.xlu0 %v337
      %v353 = vpop.xlane.xlu0 %352
      %v354 = vlaneseq
      %v355 = vand.u32 %v354, 127
      %vm356 = vcmp.eq.s32.totalorder %v355, %v339
      %vm357 = vcmp.eq.s32.totalorder %v355, %v341
      %vm358 = vcmp.eq.s32.totalorder %v355, %v343
      %vm359 = vcmp.eq.s32.totalorder %v355, %v345
      %vm360 = vcmp.eq.s32.totalorder %v355, %v347
      %vm361 = vcmp.eq.s32.totalorder %v355, %v349
      %vm362 = vcmp.eq.s32.totalorder %v355, %v351
      %vm363 = vcmp.eq.s32.totalorder %v355, %v353
      %v364 = vsel %vm356, 1, 0
      %v365 = vsel %vm357, 1, 0
      %v366 = vsel %vm358, 1, 0
      %v367 = vsel %vm359, 1, 0
      %v368 = vsel %vm360, 1, 0
      %v369 = vsel %vm361, 1, 0
      %v370 = vsel %vm362, 1, 0
      %v371 = vsel %vm363, 1, 0
      %v372 = vcvt.s32.f32 %v364
      %v373 = vcvt.s32.f32 %v365
      %v374 = vcvt.s32.f32 %v366
      %v375 = vcvt.s32.f32 %v367
      %v376 = vcvt.s32.f32 %v368
      %v377 = vcvt.s32.f32 %v369
      %v378 = vcvt.s32.f32 %v370
      %v379 = vcvt.s32.f32 %v371
      %380 = vmatpush.xpose.msra.mxu0 0.0
      %381 = vmatpush.xpose.msra.mxu0 0.0
      %382 = vmatpush.xpose.msra.mxu0 0.0
      %383 = vmatpush.xpose.msra.mxu0 0.0
      %384 = vmatpush.xpose.msra.mxu0 0.0
      %385 = vmatpush.xpose.msra.mxu0 0.0
      %386 = vmatpush.xpose.msra.mxu0 0.0
      %387 = vmatpush.xpose.msra.mxu0 0.0
      %388 = vmatpush.xpose.msra.mxu0 0.0
      %389 = vmatpush.xpose.msra.mxu0 0.0
      %390 = vmatpush.xpose.msra.mxu0 0.0
      %391 = vmatpush.xpose.msra.mxu0 0.0
      %392 = vmatpush.xpose.msra.mxu0 %v251
      %393 = vmatpush.xpose.msra.mxu0 %v250
      %394 = vmatpush.xpose.msra.mxu0 %v249
      %395 = vmatpush.xpose.msra.mxu0 %v248
      %396 = vmatmul.f32.gmra.mxu0 %v372
      %v397 = vpop.f32.mrf.mxu0
      %v398 = vadd.f32 0.0, %v397
      %399 = vmatmul.f32.gmra.mxu0 %v373
      %v400 = vpop.f32.mrf.mxu0
      %v401 = vadd.f32 0.0, %v400
      %402 = vmatmul.f32.gmra.mxu0 %v374
      %v403 = vpop.f32.mrf.mxu0
      %v404 = vadd.f32 0.0, %v403
      %405 = vmatmul.f32.gmra.mxu0 %v375
      %v406 = vpop.f32.mrf.mxu0
      %v407 = vadd.f32 0.0, %v406
      %408 = vmatmul.f32.gmra.mxu0 %v376
      %v409 = vpop.f32.mrf.mxu0
      %v410 = vadd.f32 0.0, %v409
      %411 = vmatmul.f32.gmra.mxu0 %v377
      %v412 = vpop.f32.mrf.mxu0
      %v413 = vadd.f32 0.0, %v412
      %414 = vmatmul.f32.gmra.mxu0 %v378
      %v415 = vpop.f32.mrf.mxu0
      %v416 = vadd.f32 0.0, %v415
      %417 = vmatmul.f32.gmra.mxu0 %v379
      %v418 = vpop.f32.mrf.mxu0
      %v419 = vadd.f32 0.0, %v418
      %420 = vdwg.mxu0
      %v421 = vsub.f32 %v398, %v253
      %v422 = vsub.f32 %v401, %v254
      %v423 = vsub.f32 %v404, %v255
      %v424 = vsub.f32 %v407, %v256
      %v425 = vsub.f32 %v410, %v257
      %v426 = vsub.f32 %v413, %v258
      %v427 = vsub.f32 %v416, %v259
      %v428 = vsub.f32 %v419, %v260
      %v429 = vmul.f32 %v421, %v421
      %v430 = vmul.f32 %v422, %v422
      %v431 = vmul.f32 %v423, %v423
      %v432 = vmul.f32 %v424, %v424
      %v433 = vmul.f32 %v425, %v425
      %v434 = vmul.f32 %v426, %v426
      %v435 = vmul.f32 %v427, %v427
      %v436 = vmul.f32 %v428, %v428
      %v437 = vsel %vm261, %v429, 0.0
      %438 = vadd.xlane.f32.xlu0 %v437
      %v439 = vpop.xlane.xlu0 %438
      %v440 = vsel %vm261, %v430, 0.0
      %441 = vadd.xlane.f32.xlu0 %v440
      %v442 = vpop.xlane.xlu0 %441
      %v443 = vsel %vm261, %v431, 0.0
      %444 = vadd.xlane.f32.xlu0 %v443
      %v445 = vpop.xlane.xlu0 %444
      %v446 = vsel %vm261, %v432, 0.0
      %447 = vadd.xlane.f32.xlu0 %v446
      %v448 = vpop.xlane.xlu0 %447
      %v449 = vsel %vm261, %v433, 0.0
      %450 = vadd.xlane.f32.xlu0 %v449
      %v451 = vpop.xlane.xlu0 %450
      %v452 = vsel %vm261, %v434, 0.0
      %453 = vadd.xlane.f32.xlu0 %v452
      %v454 = vpop.xlane.xlu0 %453
      %v455 = vsel %vm261, %v435, 0.0
      %456 = vadd.xlane.f32.xlu0 %v455
      %v457 = vpop.xlane.xlu0 %456
      %v458 = vsel %vm261, %v436, 0.0
      %459 = vadd.xlane.f32.xlu0 %v458
      %v460 = vpop.xlane.xlu0 %459
      %461 = vrot.lane.b32.xlu0 %v253, 96
      %v462 = vpop.permute.xlu0 %461
      %463 = vrot.lane.b32.xlu0 %v254, 96
      %v464 = vpop.permute.xlu0 %463
      %465 = vrot.lane.b32.xlu0 %v255, 96
      %v466 = vpop.permute.xlu0 %465
      %467 = vrot.lane.b32.xlu0 %v256, 96
      %v468 = vpop.permute.xlu0 %467
      %469 = vrot.lane.b32.xlu0 %v257, 96
      %v470 = vpop.permute.xlu0 %469
      %471 = vrot.lane.b32.xlu0 %v258, 96
      %v472 = vpop.permute.xlu0 %471
      %473 = vrot.lane.b32.xlu0 %v259, 96
      %v474 = vpop.permute.xlu0 %473
      %475 = vrot.lane.b32.xlu0 %v260, 96
      %v476 = vpop.permute.xlu0 %475
      %v477 = vsel %vm261, %v462, 0
      %v479 = vsel %vm261, %v464, 0
      %v481 = vsel %vm261, %v466, 0
      %v483 = vsel %vm261, %v468, 0
      %v485 = vsel %vm261, %v470, 0
      %v487 = vsel %vm261, %v472, 0
      %v489 = vsel %vm261, %v474, 0
      %v491 = vsel %vm261, %v476, 0
      %493 = vmatpush.msra.mxu0 0.0
      %494 = vmatpush.msra.mxu0 0.0
      %495 = vmatpush.msra.mxu0 0.0
      %496 = vmatpush.msra.mxu0 0.0
      %497 = vmatpush.msra.mxu0 0.0
      %498 = vmatpush.msra.mxu0 0.0
      %499 = vmatpush.msra.mxu0 0.0
      %500 = vmatpush.msra.mxu0 0.0
      %501 = vmatpush.msra.mxu0 0.0
      %502 = vmatpush.msra.mxu0 0.0
      %503 = vmatpush.msra.mxu0 0.0
      %504 = vmatpush.msra.mxu0 0.0
      %505 = vmatpush.msra.mxu0 %v251
      %506 = vmatpush.msra.mxu0 %v250
      %507 = vmatpush.msra.mxu0 %v249
      %508 = vmatpush.msra.mxu0 %v248
      %509 = vmatmul.f32.gmra.mxu0 %v477
      %v510 = vpop.f32.mrf.mxu0
      %v511 = vadd.f32 0.0, %v510
      %512 = vmatmul.f32.gmra.mxu0 %v479
      %v513 = vpop.f32.mrf.mxu0
      %v514 = vadd.f32 0.0, %v513
      %515 = vmatmul.f32.gmra.mxu0 %v481
      %v516 = vpop.f32.mrf.mxu0
      %v517 = vadd.f32 0.0, %v516
      %518 = vmatmul.f32.gmra.mxu0 %v483
      %v519 = vpop.f32.mrf.mxu0
      %v520 = vadd.f32 0.0, %v519
      %521 = vmatmul.f32.gmra.mxu0 %v485
      %v522 = vpop.f32.mrf.mxu0
      %v523 = vadd.f32 0.0, %v522
      %524 = vmatmul.f32.gmra.mxu0 %v487
      %v525 = vpop.f32.mrf.mxu0
      %v526 = vadd.f32 0.0, %v525
      %527 = vmatmul.f32.gmra.mxu0 %v489
      %v528 = vpop.f32.mrf.mxu0
      %v529 = vadd.f32 0.0, %v528
      %530 = vmatmul.f32.gmra.mxu0 %v491
      %v531 = vpop.f32.mrf.mxu0
      %v532 = vadd.f32 0.0, %v531
      %533 = vdwg.mxu0
      %v534 = vsub.f32 %v328, %v511
      %v535 = vsub.f32 %v328, %v514
      %v536 = vsub.f32 %v328, %v517
      %v537 = vsub.f32 %v328, %v520
      %v538 = vsub.f32 %v328, %v523
      %v539 = vsub.f32 %v328, %v526
      %v540 = vsub.f32 %v328, %v529
      %v541 = vsub.f32 %v328, %v532
      %542 = vmin.index.xlane.f32.xlu0 %v534
      %v543 = vpop.xlane.xlu0 %542
      %544 = vmin.index.xlane.f32.xlu0 %v535
      %v545 = vpop.xlane.xlu0 %544
      %546 = vmin.index.xlane.f32.xlu0 %v536
      %v547 = vpop.xlane.xlu0 %546
      %548 = vmin.index.xlane.f32.xlu0 %v537
      %v549 = vpop.xlane.xlu0 %548
      %550 = vmin.index.xlane.f32.xlu0 %v538
      %v551 = vpop.xlane.xlu0 %550
      %552 = vmin.index.xlane.f32.xlu0 %v539
      %v553 = vpop.xlane.xlu0 %552
      %554 = vmin.index.xlane.f32.xlu0 %v540
      %v555 = vpop.xlane.xlu0 %554
      %556 = vmin.index.xlane.f32.xlu0 %v541
      %v557 = vpop.xlane.xlu0 %556
      %vm558 = vcmp.eq.s32.totalorder %v355, %v543
      %vm559 = vcmp.eq.s32.totalorder %v355, %v545
      %vm560 = vcmp.eq.s32.totalorder %v355, %v547
      %vm561 = vcmp.eq.s32.totalorder %v355, %v549
      %vm562 = vcmp.eq.s32.totalorder %v355, %v551
      %vm563 = vcmp.eq.s32.totalorder %v355, %v553
      %vm564 = vcmp.eq.s32.totalorder %v355, %v555
      %vm565 = vcmp.eq.s32.totalorder %v355, %v557
      %v566 = vsel %vm558, 1, 0
      %v567 = vsel %vm559, 1, 0
      %v568 = vsel %vm560, 1, 0
      %v569 = vsel %vm561, 1, 0
      %v570 = vsel %vm562, 1, 0
      %v571 = vsel %vm563, 1, 0
      %v572 = vsel %vm564, 1, 0
      %v573 = vsel %vm565, 1, 0
      %v574 = vcvt.s32.f32 %v566
      %v575 = vcvt.s32.f32 %v567
      %v576 = vcvt.s32.f32 %v568
      %v577 = vcvt.s32.f32 %v569
      %v578 = vcvt.s32.f32 %v570
      %v579 = vcvt.s32.f32 %v571
      %v580 = vcvt.s32.f32 %v572
      %v581 = vcvt.s32.f32 %v573
      %582 = vmatpush.xpose.msra.mxu0 0.0
      %583 = vmatpush.xpose.msra.mxu0 0.0
      %584 = vmatpush.xpose.msra.mxu0 0.0
      %585 = vmatpush.xpose.msra.mxu0 0.0
      %586 = vmatpush.xpose.msra.mxu0 0.0
      %587 = vmatpush.xpose.msra.mxu0 0.0
      %588 = vmatpush.xpose.msra.mxu0 0.0
      %589 = vmatpush.xpose.msra.mxu0 0.0
      %590 = vmatpush.xpose.msra.mxu0 0.0
      %591 = vmatpush.xpose.msra.mxu0 0.0
      %592 = vmatpush.xpose.msra.mxu0 0.0
      %593 = vmatpush.xpose.msra.mxu0 0.0
      %594 = vmatpush.xpose.msra.mxu0 %v251
      %595 = vmatpush.xpose.msra.mxu0 %v250
      %596 = vmatpush.xpose.msra.mxu0 %v249
      %597 = vmatpush.xpose.msra.mxu0 %v248
      %598 = vmatmul.f32.gmra.mxu0 %v574
      %v599 = vpop.f32.mrf.mxu0
      %v600 = vadd.f32 0.0, %v599
      %601 = vmatmul.f32.gmra.mxu0 %v575
      %v602 = vpop.f32.mrf.mxu0
      %v603 = vadd.f32 0.0, %v602
      %604 = vmatmul.f32.gmra.mxu0 %v576
      %v605 = vpop.f32.mrf.mxu0
      %v606 = vadd.f32 0.0, %v605
      %607 = vmatmul.f32.gmra.mxu0 %v577
      %v608 = vpop.f32.mrf.mxu0
      %v609 = vadd.f32 0.0, %v608
      %610 = vmatmul.f32.gmra.mxu0 %v578
      %v611 = vpop.f32.mrf.mxu0
      %v612 = vadd.f32 0.0, %v611
      %613 = vmatmul.f32.gmra.mxu0 %v579
      %v614 = vpop.f32.mrf.mxu0
      %v615 = vadd.f32 0.0, %v614
      %616 = vmatmul.f32.gmra.mxu0 %v580
      %v617 = vpop.f32.mrf.mxu0
      %v618 = vadd.f32 0.0, %v617
      %619 = vmatmul.f32.gmra.mxu0 %v581
      %v620 = vpop.f32.mrf.mxu0
      %v621 = vadd.f32 0.0, %v620
      %622 = vdwg.mxu0
      %v631 = vsub.f32 %v600, %v462
      %v632 = vsub.f32 %v603, %v464
      %v633 = vsub.f32 %v606, %v466
      %v634 = vsub.f32 %v609, %v468
      %v635 = vsub.f32 %v612, %v470
      %v636 = vsub.f32 %v615, %v472
      %v637 = vsub.f32 %v618, %v474
      %v638 = vsub.f32 %v621, %v476
      %v639 = vmul.f32 %v631, %v631
      %v640 = vmul.f32 %v632, %v632
      %v641 = vmul.f32 %v633, %v633
      %v642 = vmul.f32 %v634, %v634
      %v643 = vmul.f32 %v635, %v635
      %v644 = vmul.f32 %v636, %v636
      %v645 = vmul.f32 %v637, %v637
      %v646 = vmul.f32 %v638, %v638
      %v647 = vsel %vm261, %v639, 0.0
      %648 = vadd.xlane.f32.xlu0 %v647
      %v649 = vpop.xlane.xlu0 %648
      %v650 = vsel %vm261, %v640, 0.0
      %651 = vadd.xlane.f32.xlu0 %v650
      %v652 = vpop.xlane.xlu0 %651
      %v653 = vsel %vm261, %v641, 0.0
      %654 = vadd.xlane.f32.xlu0 %v653
      %v655 = vpop.xlane.xlu0 %654
      %v656 = vsel %vm261, %v642, 0.0
      %657 = vadd.xlane.f32.xlu0 %v656
      %v658 = vpop.xlane.xlu0 %657
      %v659 = vsel %vm261, %v643, 0.0
      %660 = vadd.xlane.f32.xlu0 %v659
      %v661 = vpop.xlane.xlu0 %660
      %v662 = vsel %vm261, %v644, 0.0
      %663 = vadd.xlane.f32.xlu0 %v662
      %v664 = vpop.xlane.xlu0 %663
      %v665 = vsel %vm261, %v645, 0.0
      %666 = vadd.xlane.f32.xlu0 %v665
      %v667 = vpop.xlane.xlu0 %666
      %v668 = vsel %vm261, %v646, 0.0
      %669 = vadd.xlane.f32.xlu0 %v668
      %v670 = vpop.xlane.xlu0 %669
      %671 = vrot.lane.b32.xlu0 %v253, 64
      %v672 = vpop.permute.xlu0 %671
      %673 = vrot.lane.b32.xlu0 %v254, 64
      %v674 = vpop.permute.xlu0 %673
      %675 = vrot.lane.b32.xlu0 %v255, 64
      %v676 = vpop.permute.xlu0 %675
      %677 = vrot.lane.b32.xlu0 %v256, 64
      %v678 = vpop.permute.xlu0 %677
      %679 = vrot.lane.b32.xlu0 %v257, 64
      %v680 = vpop.permute.xlu0 %679
      %681 = vrot.lane.b32.xlu0 %v258, 64
      %v682 = vpop.permute.xlu0 %681
      %683 = vrot.lane.b32.xlu0 %v259, 64
      %v684 = vpop.permute.xlu0 %683
      %685 = vrot.lane.b32.xlu0 %v260, 64
      %v686 = vpop.permute.xlu0 %685
      %v687 = vsel %vm261, %v672, 0
      %v689 = vsel %vm261, %v674, 0
      %v691 = vsel %vm261, %v676, 0
      %v693 = vsel %vm261, %v678, 0
      %v695 = vsel %vm261, %v680, 0
      %v697 = vsel %vm261, %v682, 0
      %v699 = vsel %vm261, %v684, 0
      %v701 = vsel %vm261, %v686, 0
      %703 = vmatpush.msra.mxu0 0.0
      %704 = vmatpush.msra.mxu0 0.0
      %705 = vmatpush.msra.mxu0 0.0
      %706 = vmatpush.msra.mxu0 0.0
      %707 = vmatpush.msra.mxu0 0.0
      %708 = vmatpush.msra.mxu0 0.0
      %709 = vmatpush.msra.mxu0 0.0
      %710 = vmatpush.msra.mxu0 0.0
      %711 = vmatpush.msra.mxu0 0.0
      %712 = vmatpush.msra.mxu0 0.0
      %713 = vmatpush.msra.mxu0 0.0
      %714 = vmatpush.msra.mxu0 0.0
      %715 = vmatpush.msra.mxu0 %v251
      %716 = vmatpush.msra.mxu0 %v250
      %717 = vmatpush.msra.mxu0 %v249
      %718 = vmatpush.msra.mxu0 %v248
      %719 = vmatmul.f32.gmra.mxu0 %v687
      %v720 = vpop.f32.mrf.mxu0
      %v721 = vadd.f32 0.0, %v720
      %722 = vmatmul.f32.gmra.mxu0 %v689
      %v723 = vpop.f32.mrf.mxu0
      %v724 = vadd.f32 0.0, %v723
      %725 = vmatmul.f32.gmra.mxu0 %v691
      %v726 = vpop.f32.mrf.mxu0
      %v727 = vadd.f32 0.0, %v726
      %728 = vmatmul.f32.gmra.mxu0 %v693
      %v729 = vpop.f32.mrf.mxu0
      %v730 = vadd.f32 0.0, %v729
      %731 = vmatmul.f32.gmra.mxu0 %v695
      %v732 = vpop.f32.mrf.mxu0
      %v733 = vadd.f32 0.0, %v732
      %734 = vmatmul.f32.gmra.mxu0 %v697
      %v735 = vpop.f32.mrf.mxu0
      %v736 = vadd.f32 0.0, %v735
      %737 = vmatmul.f32.gmra.mxu0 %v699
      %v738 = vpop.f32.mrf.mxu0
      %v739 = vadd.f32 0.0, %v738
      %740 = vmatmul.f32.gmra.mxu0 %v701
      %v741 = vpop.f32.mrf.mxu0
      %v742 = vadd.f32 0.0, %v741
      %743 = vdwg.mxu0
      %v744 = vsub.f32 %v328, %v721
      %v745 = vsub.f32 %v328, %v724
      %v746 = vsub.f32 %v328, %v727
      %v747 = vsub.f32 %v328, %v730
      %v748 = vsub.f32 %v328, %v733
      %v749 = vsub.f32 %v328, %v736
      %v750 = vsub.f32 %v328, %v739
      %v751 = vsub.f32 %v328, %v742
      %752 = vmin.index.xlane.f32.xlu0 %v744
      %v753 = vpop.xlane.xlu0 %752
      %754 = vmin.index.xlane.f32.xlu0 %v745
      %v755 = vpop.xlane.xlu0 %754
      %756 = vmin.index.xlane.f32.xlu0 %v746
      %v757 = vpop.xlane.xlu0 %756
      %758 = vmin.index.xlane.f32.xlu0 %v747
      %v759 = vpop.xlane.xlu0 %758
      %760 = vmin.index.xlane.f32.xlu0 %v748
      %v761 = vpop.xlane.xlu0 %760
      %762 = vmin.index.xlane.f32.xlu0 %v749
      %v763 = vpop.xlane.xlu0 %762
      %764 = vmin.index.xlane.f32.xlu0 %v750
      %v765 = vpop.xlane.xlu0 %764
      %766 = vmin.index.xlane.f32.xlu0 %v751
      %v767 = vpop.xlane.xlu0 %766
      %vm768 = vcmp.eq.s32.totalorder %v355, %v753
      %vm769 = vcmp.eq.s32.totalorder %v355, %v755
      %vm770 = vcmp.eq.s32.totalorder %v355, %v757
      %vm771 = vcmp.eq.s32.totalorder %v355, %v759
      %vm772 = vcmp.eq.s32.totalorder %v355, %v761
      %vm773 = vcmp.eq.s32.totalorder %v355, %v763
      %vm774 = vcmp.eq.s32.totalorder %v355, %v765
      %vm775 = vcmp.eq.s32.totalorder %v355, %v767
      %v776 = vsel %vm768, 1, 0
      %v777 = vsel %vm769, 1, 0
      %v778 = vsel %vm770, 1, 0
      %v779 = vsel %vm771, 1, 0
      %v780 = vsel %vm772, 1, 0
      %v781 = vsel %vm773, 1, 0
      %v782 = vsel %vm774, 1, 0
      %v783 = vsel %vm775, 1, 0
      %v784 = vcvt.s32.f32 %v776
      %v785 = vcvt.s32.f32 %v777
      %v786 = vcvt.s32.f32 %v778
      %v787 = vcvt.s32.f32 %v779
      %v788 = vcvt.s32.f32 %v780
      %v789 = vcvt.s32.f32 %v781
      %v790 = vcvt.s32.f32 %v782
      %v791 = vcvt.s32.f32 %v783
      %792 = vmatpush.xpose.msra.mxu0 0.0
      %793 = vmatpush.xpose.msra.mxu0 0.0
      %794 = vmatpush.xpose.msra.mxu0 0.0
      %795 = vmatpush.xpose.msra.mxu0 0.0
      %796 = vmatpush.xpose.msra.mxu0 0.0
      %797 = vmatpush.xpose.msra.mxu0 0.0
      %798 = vmatpush.xpose.msra.mxu0 0.0
      %799 = vmatpush.xpose.msra.mxu0 0.0
      %800 = vmatpush.xpose.msra.mxu0 0.0
      %801 = vmatpush.xpose.msra.mxu0 0.0
      %802 = vmatpush.xpose.msra.mxu0 0.0
      %803 = vmatpush.xpose.msra.mxu0 0.0
      %804 = vmatpush.xpose.msra.mxu0 %v251
      %805 = vmatpush.xpose.msra.mxu0 %v250
      %806 = vmatpush.xpose.msra.mxu0 %v249
      %807 = vmatpush.xpose.msra.mxu0 %v248
      %808 = vmatmul.f32.gmra.mxu0 %v784
      %v809 = vpop.f32.mrf.mxu0
      %v810 = vadd.f32 0.0, %v809
      %811 = vmatmul.f32.gmra.mxu0 %v785
      %v812 = vpop.f32.mrf.mxu0
      %v813 = vadd.f32 0.0, %v812
      %814 = vmatmul.f32.gmra.mxu0 %v786
      %v815 = vpop.f32.mrf.mxu0
      %v816 = vadd.f32 0.0, %v815
      %817 = vmatmul.f32.gmra.mxu0 %v787
      %v818 = vpop.f32.mrf.mxu0
      %v819 = vadd.f32 0.0, %v818
      %820 = vmatmul.f32.gmra.mxu0 %v788
      %v821 = vpop.f32.mrf.mxu0
      %v822 = vadd.f32 0.0, %v821
      %823 = vmatmul.f32.gmra.mxu0 %v789
      %v824 = vpop.f32.mrf.mxu0
      %v825 = vadd.f32 0.0, %v824
      %826 = vmatmul.f32.gmra.mxu0 %v790
      %v827 = vpop.f32.mrf.mxu0
      %v828 = vadd.f32 0.0, %v827
      %829 = vmatmul.f32.gmra.mxu0 %v791
      %v830 = vpop.f32.mrf.mxu0
      %v831 = vadd.f32 0.0, %v830
      %832 = vdwg.mxu0
      %v841 = vsub.f32 %v810, %v672
      %v842 = vsub.f32 %v813, %v674
      %v843 = vsub.f32 %v816, %v676
      %v844 = vsub.f32 %v819, %v678
      %v845 = vsub.f32 %v822, %v680
      %v846 = vsub.f32 %v825, %v682
      %v847 = vsub.f32 %v828, %v684
      %v848 = vsub.f32 %v831, %v686
      %v849 = vmul.f32 %v841, %v841
      %v850 = vmul.f32 %v842, %v842
      %v851 = vmul.f32 %v843, %v843
      %v852 = vmul.f32 %v844, %v844
      %v853 = vmul.f32 %v845, %v845
      %v854 = vmul.f32 %v846, %v846
      %v855 = vmul.f32 %v847, %v847
      %v856 = vmul.f32 %v848, %v848
      %v857 = vsel %vm261, %v849, 0.0
      %858 = vadd.xlane.f32.xlu0 %v857
      %v859 = vpop.xlane.xlu0 %858
      %v860 = vsel %vm261, %v850, 0.0
      %861 = vadd.xlane.f32.xlu0 %v860
      %v862 = vpop.xlane.xlu0 %861
      %v863 = vsel %vm261, %v851, 0.0
      %864 = vadd.xlane.f32.xlu0 %v863
      %v865 = vpop.xlane.xlu0 %864
      %v866 = vsel %vm261, %v852, 0.0
      %867 = vadd.xlane.f32.xlu0 %v866
      %v868 = vpop.xlane.xlu0 %867
      %v869 = vsel %vm261, %v853, 0.0
      %870 = vadd.xlane.f32.xlu0 %v869
      %v871 = vpop.xlane.xlu0 %870
      %v872 = vsel %vm261, %v854, 0.0
      %873 = vadd.xlane.f32.xlu0 %v872
      %v874 = vpop.xlane.xlu0 %873
      %v875 = vsel %vm261, %v855, 0.0
      %876 = vadd.xlane.f32.xlu0 %v875
      %v877 = vpop.xlane.xlu0 %876
      %v878 = vsel %vm261, %v856, 0.0
      %879 = vadd.xlane.f32.xlu0 %v878
      %v880 = vpop.xlane.xlu0 %879
      %881 = vrot.lane.b32.xlu0 %v253, 32
      %v882 = vpop.permute.xlu0 %881
      %883 = vrot.lane.b32.xlu0 %v254, 32
      %v884 = vpop.permute.xlu0 %883
      %885 = vrot.lane.b32.xlu0 %v255, 32
      %v886 = vpop.permute.xlu0 %885
      %887 = vrot.lane.b32.xlu0 %v256, 32
      %v888 = vpop.permute.xlu0 %887
      %889 = vrot.lane.b32.xlu0 %v257, 32
      %v890 = vpop.permute.xlu0 %889
      %891 = vrot.lane.b32.xlu0 %v258, 32
      %v892 = vpop.permute.xlu0 %891
      %893 = vrot.lane.b32.xlu0 %v259, 32
      %v894 = vpop.permute.xlu0 %893
      %895 = vrot.lane.b32.xlu0 %v260, 32
      %v896 = vpop.permute.xlu0 %895
      %v897 = vsel %vm261, %v882, 0
      %v899 = vsel %vm261, %v884, 0
      %v901 = vsel %vm261, %v886, 0
      %v903 = vsel %vm261, %v888, 0
      %v905 = vsel %vm261, %v890, 0
      %v907 = vsel %vm261, %v892, 0
      %v909 = vsel %vm261, %v894, 0
      %v911 = vsel %vm261, %v896, 0
      %913 = vmatpush.msra.mxu0 0.0
      %914 = vmatpush.msra.mxu0 0.0
      %915 = vmatpush.msra.mxu0 0.0
      %916 = vmatpush.msra.mxu0 0.0
      %917 = vmatpush.msra.mxu0 0.0
      %918 = vmatpush.msra.mxu0 0.0
      %919 = vmatpush.msra.mxu0 0.0
      %920 = vmatpush.msra.mxu0 0.0
      %921 = vmatpush.msra.mxu0 0.0
      %922 = vmatpush.msra.mxu0 0.0
      %923 = vmatpush.msra.mxu0 0.0
      %924 = vmatpush.msra.mxu0 0.0
      %925 = vmatpush.msra.mxu0 %v251
      %926 = vmatpush.msra.mxu0 %v250
      %927 = vmatpush.msra.mxu0 %v249
      %928 = vmatpush.msra.mxu0 %v248
      %929 = vmatmul.f32.gmra.mxu0 %v897
      %v930 = vpop.f32.mrf.mxu0
      %v931 = vadd.f32 0.0, %v930
      %932 = vmatmul.f32.gmra.mxu0 %v899
      %v933 = vpop.f32.mrf.mxu0
      %v934 = vadd.f32 0.0, %v933
      %935 = vmatmul.f32.gmra.mxu0 %v901
      %v936 = vpop.f32.mrf.mxu0
      %v937 = vadd.f32 0.0, %v936
      %938 = vmatmul.f32.gmra.mxu0 %v903
      %v939 = vpop.f32.mrf.mxu0
      %v940 = vadd.f32 0.0, %v939
      %941 = vmatmul.f32.gmra.mxu0 %v905
      %v942 = vpop.f32.mrf.mxu0
      %v943 = vadd.f32 0.0, %v942
      %944 = vmatmul.f32.gmra.mxu0 %v907
      %v945 = vpop.f32.mrf.mxu0
      %v946 = vadd.f32 0.0, %v945
      %947 = vmatmul.f32.gmra.mxu0 %v909
      %v948 = vpop.f32.mrf.mxu0
      %v949 = vadd.f32 0.0, %v948
      %950 = vmatmul.f32.gmra.mxu0 %v911
      %v951 = vpop.f32.mrf.mxu0
      %v952 = vadd.f32 0.0, %v951
      %953 = vdwg.mxu0
      %v954 = vsub.f32 %v328, %v931
      %v955 = vsub.f32 %v328, %v934
      %v956 = vsub.f32 %v328, %v937
      %v957 = vsub.f32 %v328, %v940
      %v958 = vsub.f32 %v328, %v943
      %v959 = vsub.f32 %v328, %v946
      %v960 = vsub.f32 %v328, %v949
      %v961 = vsub.f32 %v328, %v952
      %962 = vmin.index.xlane.f32.xlu0 %v954
      %v963 = vpop.xlane.xlu0 %962
      %964 = vmin.index.xlane.f32.xlu0 %v955
      %v965 = vpop.xlane.xlu0 %964
      %966 = vmin.index.xlane.f32.xlu0 %v956
      %v967 = vpop.xlane.xlu0 %966
      %968 = vmin.index.xlane.f32.xlu0 %v957
      %v969 = vpop.xlane.xlu0 %968
      %970 = vmin.index.xlane.f32.xlu0 %v958
      %v971 = vpop.xlane.xlu0 %970
      %972 = vmin.index.xlane.f32.xlu0 %v959
      %v973 = vpop.xlane.xlu0 %972
      %974 = vmin.index.xlane.f32.xlu0 %v960
      %v975 = vpop.xlane.xlu0 %974
      %976 = vmin.index.xlane.f32.xlu0 %v961
      %v977 = vpop.xlane.xlu0 %976
      %vm978 = vcmp.eq.s32.totalorder %v355, %v963
      %vm979 = vcmp.eq.s32.totalorder %v355, %v965
      %vm980 = vcmp.eq.s32.totalorder %v355, %v967
      %vm981 = vcmp.eq.s32.totalorder %v355, %v969
      %vm982 = vcmp.eq.s32.totalorder %v355, %v971
      %vm983 = vcmp.eq.s32.totalorder %v355, %v973
      %vm984 = vcmp.eq.s32.totalorder %v355, %v975
      %vm985 = vcmp.eq.s32.totalorder %v355, %v977
      %v986 = vsel %vm978, 1, 0
      %v987 = vsel %vm979, 1, 0
      %v988 = vsel %vm980, 1, 0
      %v989 = vsel %vm981, 1, 0
      %v990 = vsel %vm982, 1, 0
      %v991 = vsel %vm983, 1, 0
      %v992 = vsel %vm984, 1, 0
      %v993 = vsel %vm985, 1, 0
      %v994 = vcvt.s32.f32 %v986
      %v995 = vcvt.s32.f32 %v987
      %v996 = vcvt.s32.f32 %v988
      %v997 = vcvt.s32.f32 %v989
      %v998 = vcvt.s32.f32 %v990
      %v999 = vcvt.s32.f32 %v991
      %v1000 = vcvt.s32.f32 %v992
      %v1001 = vcvt.s32.f32 %v993
      %1002 = vmatpush.xpose.msra.mxu0 0.0
      %1003 = vmatpush.xpose.msra.mxu0 0.0
      %1004 = vmatpush.xpose.msra.mxu0 0.0
      %1005 = vmatpush.xpose.msra.mxu0 0.0
      %1006 = vmatpush.xpose.msra.mxu0 0.0
      %1007 = vmatpush.xpose.msra.mxu0 0.0
      %1008 = vmatpush.xpose.msra.mxu0 0.0
      %1009 = vmatpush.xpose.msra.mxu0 0.0
      %1010 = vmatpush.xpose.msra.mxu0 0.0
      %1011 = vmatpush.xpose.msra.mxu0 0.0
      %1012 = vmatpush.xpose.msra.mxu0 0.0
      %1013 = vmatpush.xpose.msra.mxu0 0.0
      %1014 = vmatpush.xpose.msra.mxu0 %v251
      %1015 = vmatpush.xpose.msra.mxu0 %v250
      %1016 = vmatpush.xpose.msra.mxu0 %v249
      %1017 = vmatpush.xpose.msra.mxu0 %v248
      %1018 = vmatmul.f32.gmra.mxu0 %v994
      %v1019 = vpop.f32.mrf.mxu0
      %v1020 = vadd.f32 0.0, %v1019
      %1021 = vmatmul.f32.gmra.mxu0 %v995
      %v1022 = vpop.f32.mrf.mxu0
      %v1023 = vadd.f32 0.0, %v1022
      %1024 = vmatmul.f32.gmra.mxu0 %v996
      %v1025 = vpop.f32.mrf.mxu0
      %v1026 = vadd.f32 0.0, %v1025
      %1027 = vmatmul.f32.gmra.mxu0 %v997
      %v1028 = vpop.f32.mrf.mxu0
      %v1029 = vadd.f32 0.0, %v1028
      %1030 = vmatmul.f32.gmra.mxu0 %v998
      %v1031 = vpop.f32.mrf.mxu0
      %v1032 = vadd.f32 0.0, %v1031
      %1033 = vmatmul.f32.gmra.mxu0 %v999
      %v1034 = vpop.f32.mrf.mxu0
      %v1035 = vadd.f32 0.0, %v1034
      %1036 = vmatmul.f32.gmra.mxu0 %v1000
      %v1037 = vpop.f32.mrf.mxu0
      %v1038 = vadd.f32 0.0, %v1037
      %1039 = vmatmul.f32.gmra.mxu0 %v1001
      %v1040 = vpop.f32.mrf.mxu0
      %v1041 = vadd.f32 0.0, %v1040
      %1042 = vdwg.mxu0
      %v1051 = vsub.f32 %v1020, %v882
      %v1052 = vsub.f32 %v1023, %v884
      %v1053 = vsub.f32 %v1026, %v886
      %v1054 = vsub.f32 %v1029, %v888
      %v1055 = vsub.f32 %v1032, %v890
      %v1056 = vsub.f32 %v1035, %v892
      %v1057 = vsub.f32 %v1038, %v894
      %v1058 = vsub.f32 %v1041, %v896
      %v1059 = vmul.f32 %v1051, %v1051
      %v1060 = vmul.f32 %v1052, %v1052
      %v1061 = vmul.f32 %v1053, %v1053
      %v1062 = vmul.f32 %v1054, %v1054
      %v1063 = vmul.f32 %v1055, %v1055
      %v1064 = vmul.f32 %v1056, %v1056
      %v1065 = vmul.f32 %v1057, %v1057
      %v1066 = vmul.f32 %v1058, %v1058
      %v1067 = vsel %vm261, %v1059, 0.0
      %1068 = vadd.xlane.f32.xlu0 %v1067
      %v1069 = vpop.xlane.xlu0 %1068
      %v1070 = vsel %vm261, %v1060, 0.0
      %1071 = vadd.xlane.f32.xlu0 %v1070
      %v1072 = vpop.xlane.xlu0 %1071
      %v1073 = vsel %vm261, %v1061, 0.0
      %1074 = vadd.xlane.f32.xlu0 %v1073
      %v1075 = vpop.xlane.xlu0 %1074
      %v1076 = vsel %vm261, %v1062, 0.0
      %1077 = vadd.xlane.f32.xlu0 %v1076
      %v1078 = vpop.xlane.xlu0 %1077
      %v1079 = vsel %vm261, %v1063, 0.0
      %1080 = vadd.xlane.f32.xlu0 %v1079
      %v1081 = vpop.xlane.xlu0 %1080
      %v1082 = vsel %vm261, %v1064, 0.0
      %1083 = vadd.xlane.f32.xlu0 %v1082
      %v1084 = vpop.xlane.xlu0 %1083
      %v1085 = vsel %vm261, %v1065, 0.0
      %1086 = vadd.xlane.f32.xlu0 %v1085
      %v1087 = vpop.xlane.xlu0 %1086
      %v1088 = vsel %vm261, %v1066, 0.0
      %1089 = vadd.xlane.f32.xlu0 %v1088
      %v1090 = vpop.xlane.xlu0 %1089
      %1099 = vrot.lane.b32.xlu0 %v600, 32
      %v1100 = vpop.permute.xlu0 %1099
      %1101 = vrot.lane.b32.xlu0 %v603, 32
      %v1102 = vpop.permute.xlu0 %1101
      %1103 = vrot.lane.b32.xlu0 %v606, 32
      %v1104 = vpop.permute.xlu0 %1103
      %1105 = vrot.lane.b32.xlu0 %v609, 32
      %v1106 = vpop.permute.xlu0 %1105
      %1107 = vrot.lane.b32.xlu0 %v612, 32
      %v1108 = vpop.permute.xlu0 %1107
      %1109 = vrot.lane.b32.xlu0 %v615, 32
      %v1110 = vpop.permute.xlu0 %1109
      %1111 = vrot.lane.b32.xlu0 %v618, 32
      %v1112 = vpop.permute.xlu0 %1111
      %1113 = vrot.lane.b32.xlu0 %v621, 32
      %v1114 = vpop.permute.xlu0 %1113
      %1131 = vrot.lane.b32.xlu0 %v810, 64
      %v1132 = vpop.permute.xlu0 %1131
      %1133 = vrot.lane.b32.xlu0 %v813, 64
      %v1134 = vpop.permute.xlu0 %1133
      %1135 = vrot.lane.b32.xlu0 %v816, 64
      %v1136 = vpop.permute.xlu0 %1135
      %1137 = vrot.lane.b32.xlu0 %v819, 64
      %v1138 = vpop.permute.xlu0 %1137
      %1139 = vrot.lane.b32.xlu0 %v822, 64
      %v1140 = vpop.permute.xlu0 %1139
      %1141 = vrot.lane.b32.xlu0 %v825, 64
      %v1142 = vpop.permute.xlu0 %1141
      %1143 = vrot.lane.b32.xlu0 %v828, 64
      %v1144 = vpop.permute.xlu0 %1143
      %1145 = vrot.lane.b32.xlu0 %v831, 64
      %v1146 = vpop.permute.xlu0 %1145
      %1163 = vrot.lane.b32.xlu0 %v1020, 96
      %v1164 = vpop.permute.xlu0 %1163
      %1165 = vrot.lane.b32.xlu0 %v1023, 96
      %v1166 = vpop.permute.xlu0 %1165
      %1167 = vrot.lane.b32.xlu0 %v1026, 96
      %v1168 = vpop.permute.xlu0 %1167
      %1169 = vrot.lane.b32.xlu0 %v1029, 96
      %v1170 = vpop.permute.xlu0 %1169
      %1171 = vrot.lane.b32.xlu0 %v1032, 96
      %v1172 = vpop.permute.xlu0 %1171
      %1173 = vrot.lane.b32.xlu0 %v1035, 96
      %v1174 = vpop.permute.xlu0 %1173
      %1175 = vrot.lane.b32.xlu0 %v1038, 96
      %v1176 = vpop.permute.xlu0 %1175
      %1177 = vrot.lane.b32.xlu0 %v1041, 96
      %v1178 = vpop.permute.xlu0 %1177
      %v1187 = vsel %vm261, %v398, %v1100
      %v1188 = vsel %vm261, %v401, %v1102
      %v1189 = vsel %vm261, %v404, %v1104
      %v1190 = vsel %vm261, %v407, %v1106
      %v1191 = vsel %vm261, %v410, %v1108
      %v1192 = vsel %vm261, %v413, %v1110
      %v1193 = vsel %vm261, %v416, %v1112
      %v1194 = vsel %vm261, %v419, %v1114
      %vm1195 = vcmask 523264
      %v1196 = vsel %vm1195, %v1187, %v1132
      %v1197 = vsel %vm1195, %v1188, %v1134
      %v1198 = vsel %vm1195, %v1189, %v1136
      %v1199 = vsel %vm1195, %v1190, %v1138
      %v1200 = vsel %vm1195, %v1191, %v1140
      %v1201 = vsel %vm1195, %v1192, %v1142
      %v1202 = vsel %vm1195, %v1193, %v1144
      %v1203 = vsel %vm1195, %v1194, %v1146
      %vm1204 = vcmask 785408
      %v1205 = vsel %vm1204, %v1196, %v1164
      %v1206 = vsel %vm1204, %v1197, %v1166
      %v1207 = vsel %vm1204, %v1198, %v1168
      %v1208 = vsel %vm1204, %v1199, %v1170
      %v1209 = vsel %vm1204, %v1200, %v1172
      %v1210 = vsel %vm1204, %v1201, %v1174
      %v1211 = vsel %vm1204, %v1202, %v1176
      %v1212 = vsel %vm1204, %v1203, %v1178
      %1213 = vst [vmem:[%s238] sm:$0xff] %v1205
      %1214 = vst [vmem:[%s238 + $0x8] sm:$0xff] %v1206
      %1215 = vst [vmem:[%s238 + $0x10] sm:$0xff] %v1207
      %1216 = vst [vmem:[%s238 + $0x18] sm:$0xff] %v1208
      %1217 = vst [vmem:[%s238 + $0x20] sm:$0xff] %v1209
      %1218 = vst [vmem:[%s238 + $0x28] sm:$0xff] %v1210
      %1219 = vst [vmem:[%s238 + $0x30] sm:$0xff] %v1211
      %1220 = vst [vmem:[%s238 + $0x38] sm:$0xff] %v1212
      %v1221 = vperm.slane %v339, %v355
      %v1222 = vadd.s32 %v355, 4294967288
      %v1223 = vperm.slane %v341, %v1222
      %vm1224 = vcmask 130112
      %v1225 = vsel %vm1224, %v1223, %v1221
      %v1226 = vadd.s32 %v355, 4294967280
      %v1227 = vperm.slane %v343, %v1226
      %vm1228 = vcmask 195712
      %v1229 = vsel %vm1228, %v1227, %v1225
      %v1230 = vadd.s32 %v355, 4294967272
      %v1231 = vperm.slane %v345, %v1230
      %vm1232 = vcmask 261312
      %v1233 = vsel %vm1232, %v1231, %v1229
      %v1234 = vadd.s32 %v355, 4294967264
      %v1235 = vperm.slane %v347, %v1234
      %vm1236 = vcmask 326912
      %v1237 = vsel %vm1236, %v1235, %v1233
      %v1238 = vadd.s32 %v355, 4294967256
      %v1239 = vperm.slane %v349, %v1238
      %vm1240 = vcmask 392512
      %v1241 = vsel %vm1240, %v1239, %v1237
      %v1242 = vadd.s32 %v355, 4294967248
      %v1243 = vperm.slane %v351, %v1242
      %vm1244 = vcmask 458112
      %v1245 = vsel %vm1244, %v1243, %v1241
      %v1246 = vadd.s32 %v355, 4294967240
      %v1247 = vperm.slane %v353, %v1246
      %vm1248 = vcmask 523712
      %v1249 = vsel %vm1248, %v1247, %v1245
      %v1250 = vadd.s32 %v355, 4294967232
      %v1251 = vperm.slane %v543, %v1250
      %v1252 = vadd.s32 %v355, 4294967224
      %v1253 = vperm.slane %v545, %v1252
      %vm1254 = vcmask 654912
      %v1255 = vsel %vm1254, %v1253, %v1251
      %v1256 = vadd.s32 %v355, 4294967216
      %v1257 = vperm.slane %v547, %v1256
      %vm1258 = vcmask 720512
      %v1259 = vsel %vm1258, %v1257, %v1255
      %v1260 = vadd.s32 %v355, 4294967208
      %v1261 = vperm.slane %v549, %v1260
      %vm1262 = vcmask 786112
      %v1263 = vsel %vm1262, %v1261, %v1259
      %v1264 = vadd.s32 %v355, 4294967200
      %v1265 = vperm.slane %v551, %v1264
      %vm1266 = vcmask 851712
      %v1267 = vsel %vm1266, %v1265, %v1263
      %v1268 = vadd.s32 %v355, 4294967192
      %v1269 = vperm.slane %v553, %v1268
      %vm1270 = vcmask 917312
      %v1271 = vsel %vm1270, %v1269, %v1267
      %v1272 = vadd.s32 %v355, 4294967184
      %v1273 = vperm.slane %v555, %v1272
      %vm1274 = vcmask 982912
      %v1275 = vsel %vm1274, %v1273, %v1271
      %v1276 = vadd.s32 %v355, 4294967176
      %v1277 = vperm.slane %v557, %v1276
      %vm1278 = vcmask 1048512
      %v1279 = vsel %vm1278, %v1277, %v1275
      %v1280 = vperm.slane %v753, %v355
      %v1281 = vperm.slane %v755, %v1222
      %v1282 = vsel %vm1224, %v1281, %v1280
      %v1283 = vperm.slane %v757, %v1226
      %v1284 = vsel %vm1228, %v1283, %v1282
      %v1285 = vperm.slane %v759, %v1230
      %v1286 = vsel %vm1232, %v1285, %v1284
      %v1287 = vperm.slane %v761, %v1234
      %v1288 = vsel %vm1236, %v1287, %v1286
      %v1289 = vperm.slane %v763, %v1238
      %v1290 = vsel %vm1240, %v1289, %v1288
      %v1291 = vperm.slane %v765, %v1242
      %v1292 = vsel %vm1244, %v1291, %v1290
      %v1293 = vperm.slane %v767, %v1246
      %v1294 = vsel %vm1248, %v1293, %v1292
      %v1295 = vperm.slane %v963, %v1250
      %v1296 = vperm.slane %v965, %v1252
      %v1297 = vsel %vm1254, %v1296, %v1295
      %v1298 = vperm.slane %v967, %v1256
      %v1299 = vsel %vm1258, %v1298, %v1297
      %v1300 = vperm.slane %v969, %v1260
      %v1301 = vsel %vm1262, %v1300, %v1299
      %v1302 = vperm.slane %v971, %v1264
      %v1303 = vsel %vm1266, %v1302, %v1301
      %v1304 = vperm.slane %v973, %v1268
      %v1305 = vsel %vm1270, %v1304, %v1303
      %v1306 = vperm.slane %v975, %v1272
      %v1307 = vsel %vm1274, %v1306, %v1305
      %v1308 = vperm.slane %v977, %v1276
      %v1309 = vsel %vm1278, %v1308, %v1307
      %v1310 = vsel %vm1195, %v1249, %v1279
      %v1311 = vsel %vm1195, %v1294, %v1309
      %v1312 = vrot.slane %v1311, 7
      %vm1313 = vcmask 1040384
      %v1314 = vsel %vm1313, %v1310, %v1312
      %v1315 = vlaneseq
      %vm1316 = vcmp.ge.s32.totalorder %v1315, 0
      %vm1317 = vcmp.lt.s32.totalorder %v1315, 256
      %vm1318 = vmand %vm1316, %vm1317
      %1319 = vst.msk [vmem:[%s243] sm:$0x3] %vm1318, %v1314
      %p1320 = scmp.lt.s32.totalorder %s17, 1
      // Predicated region
      $region33: #{quantizer_forward.1} parent=31 // pred_check
        %p1321 = pneg %p1320
      $region34: #{quantizer_forward.1} parent=31 // pred_check_branch
        %1323 = sbr.rel (%p1321) target = $region36
      $region35: #{quantizer_forward.1} parent=31 // pred_region
        %vm1324 = vcmask 7168
        %v1325 = vsel %vm1324, %v439, 0.0
        %v1326 = vsel %vm1324, %v442, 0.0
        %v1327 = vadd.f32 %v1325, %v1326
        %v1328 = vsel %vm1324, %v445, 0.0
        %v1329 = vadd.f32 %v1327, %v1328
        %v1330 = vsel %vm1324, %v448, 0.0
        %v1331 = vadd.f32 %v1329, %v1330
        %v1332 = vsel %vm1324, %v451, 0.0
        %v1333 = vadd.f32 %v1331, %v1332
        %v1334 = vsel %vm1324, %v454, 0.0
        %v1335 = vadd.f32 %v1333, %v1334
        %v1336 = vsel %vm1324, %v457, 0.0
        %v1337 = vadd.f32 %v1335, %v1336
        %v1338 = vsel %vm1324, %v460, 0.0
        %v1339 = vadd.f32 %v1337, %v1338
        %1340 = vadd.xlane.f32.xlu0 %v1339
        %v1341 = vpop.xlane.xlu0 %1340
        %v1342 = vrot.slane %v1341, 4
        %v1343 = vadd.f32 %v1341, %v1342
        %v1344 = vrot.slane %v1343, 2
        %v1345 = vadd.f32 %v1343, %v1344
        %v1346 = vrot.slane %v1345, 1
        %v1347 = vadd.f32 %v1345, %v1346
        %s1348 = vtos %v1347
        %s1349 = sadd.f32 %s1348, 0.0
        %v1350 = vsel %vm1324, %v649, 0.0
        %v1351 = vsel %vm1324, %v652, 0.0
        %v1352 = vadd.f32 %v1350, %v1351
        %v1353 = vsel %vm1324, %v655, 0.0
        %v1354 = vadd.f32 %v1352, %v1353
        %v1355 = vsel %vm1324, %v658, 0.0
        %v1356 = vadd.f32 %v1354, %v1355
        %v1357 = vsel %vm1324, %v661, 0.0
        %v1358 = vadd.f32 %v1356, %v1357
        %v1359 = vsel %vm1324, %v664, 0.0
        %v1360 = vadd.f32 %v1358, %v1359
        %v1361 = vsel %vm1324, %v667, 0.0
        %v1362 = vadd.f32 %v1360, %v1361
        %v1363 = vsel %vm1324, %v670, 0.0
        %v1364 = vadd.f32 %v1362, %v1363
        %1365 = vadd.xlane.f32.xlu0 %v1364
        %v1366 = vpop.xlane.xlu0 %1365
        %v1367 = vrot.slane %v1366, 4
        %v1368 = vadd.f32 %v1366, %v1367
        %v1369 = vrot.slane %v1368, 2
        %v1370 = vadd.f32 %v1368, %v1369
        %v1371 = vrot.slane %v1370, 1
        %v1372 = vadd.f32 %v1370, %v1371
        %s1373 = vtos %v1372
        %s1374 = sadd.f32 %s1349, %s1373
        %v1375 = vsel %vm1324, %v859, 0.0
        %v1376 = vsel %vm1324, %v862, 0.0
        %v1377 = vadd.f32 %v1375, %v1376
        %v1378 = vsel %vm1324, %v865, 0.0
        %v1379 = vadd.f32 %v1377, %v1378
        %v1380 = vsel %vm1324, %v868, 0.0
        %v1381 = vadd.f32 %v1379, %v1380
        %v1382 = vsel %vm1324, %v871, 0.0
        %v1383 = vadd.f32 %v1381, %v1382
        %v1384 = vsel %vm1324, %v874, 0.0
        %v1385 = vadd.f32 %v1383, %v1384
        %v1386 = vsel %vm1324, %v877, 0.0
        %v1387 = vadd.f32 %v1385, %v1386
        %v1388 = vsel %vm1324, %v880, 0.0
        %v1389 = vadd.f32 %v1387, %v1388
        %1390 = vadd.xlane.f32.xlu0 %v1389
        %v1391 = vpop.xlane.xlu0 %1390
        %v1392 = vrot.slane %v1391, 4
        %v1393 = vadd.f32 %v1391, %v1392
        %v1394 = vrot.slane %v1393, 2
        %v1395 = vadd.f32 %v1393, %v1394
        %v1396 = vrot.slane %v1395, 1
        %v1397 = vadd.f32 %v1395, %v1396
        %s1398 = vtos %v1397
        %s1399 = sadd.f32 %s1374, %s1398
        %v1400 = vsel %vm1324, %v1069, 0.0
        %v1401 = vsel %vm1324, %v1072, 0.0
        %v1402 = vadd.f32 %v1400, %v1401
        %v1403 = vsel %vm1324, %v1075, 0.0
        %v1404 = vadd.f32 %v1402, %v1403
        %v1405 = vsel %vm1324, %v1078, 0.0
        %v1406 = vadd.f32 %v1404, %v1405
        %v1407 = vsel %vm1324, %v1081, 0.0
        %v1408 = vadd.f32 %v1406, %v1407
        %v1409 = vsel %vm1324, %v1084, 0.0
        %v1410 = vadd.f32 %v1408, %v1409
        %v1411 = vsel %vm1324, %v1087, 0.0
        %v1412 = vadd.f32 %v1410, %v1411
        %v1413 = vsel %vm1324, %v1090, 0.0
        %v1414 = vadd.f32 %v1412, %v1413
        %1415 = vadd.xlane.f32.xlu0 %v1414
        %v1416 = vpop.xlane.xlu0 %1415
        %v1417 = vrot.slane %v1416, 4
        %v1418 = vadd.f32 %v1416, %v1417
        %v1419 = vrot.slane %v1418, 2
        %v1420 = vadd.f32 %v1418, %v1419
        %v1421 = vrot.slane %v1420, 1
        %v1422 = vadd.f32 %v1420, %v1421
        %s1423 = vtos %v1422
        %s1424 = sadd.f32 %s1399, %s1423
        %v1425 = vstv %s1424
        %1426 = vst [vmem:[%s247] sm:$0x1] %v1425
      $region36: #{quantizer_forward.1} parent=31 // pred_fallthru
        _
      %p1427 = scmp.eq.s32.totalorder %s17, 1
      // Predicated region
      $region37: #{quantizer_forward.1} parent=31 // pred_check
        %p1428 = pneg %p1427
      $region38: #{quantizer_forward.1} parent=31 // pred_check_branch
        %1430 = sbr.rel (%p1428) target = $region40
      $region39: #{quantizer_forward.1} parent=31 // pred_region
        %s1431 = smul.u32 %s17, 256
        %v1432 = vlaneseq
        %v1433 = vshrl.u32 %v1432, 7
        %v1434 = vadd.s32 %v1433, 8
        %v1435 = vadd.s32 %v1433, 16
        %v1436 = vadd.s32 %v1433, 24
        %v1437 = vadd.s32 %v1433, 32
        %v1438 = vadd.s32 %v1433, 40
        %v1439 = vadd.s32 %v1433, 48
        %v1440 = vadd.s32 %v1433, 56
        %v1441 = vmul.u32 %v1433, 4
        %v1442 = vmul.u32 %v1434, 4
        %v1443 = vmul.u32 %v1435, 4
        %v1444 = vmul.u32 %v1436, 4
        %v1445 = vmul.u32 %v1437, 4
        %v1446 = vmul.u32 %v1438, 4
        %v1447 = vmul.u32 %v1439, 4
        %v1448 = vmul.u32 %v1440, 4
        %v1449 = vstv %s1431
        %v1450 = vadd.s32 %v1449, %v1441
        %v1451 = vadd.s32 %v1449, %v1442
        %v1452 = vadd.s32 %v1449, %v1443
        %v1453 = vadd.s32 %v1449, %v1444
        %v1454 = vadd.s32 %v1449, %v1445
        %v1455 = vadd.s32 %v1449, %v1446
        %v1456 = vadd.s32 %v1449, %v1447
        %v1457 = vadd.s32 %v1449, %v1448
        %vm1458 = vcmp.lt.s32.totalorder %v1450, 512
        %vm1459 = vcmp.lt.s32.totalorder %v1451, 512
        %vm1460 = vcmp.lt.s32.totalorder %v1452, 512
        %vm1461 = vcmp.lt.s32.totalorder %v1453, 512
        %vm1462 = vcmp.lt.s32.totalorder %v1454, 512
        %vm1463 = vcmp.lt.s32.totalorder %v1455, 512
        %vm1464 = vcmp.lt.s32.totalorder %v1456, 512
        %vm1465 = vcmp.lt.s32.totalorder %v1457, 512
        %v1466 = vsel %vm1458, 1, 0
        %v1467 = vsel %vm1459, 1, 0
        %v1468 = vsel %vm1460, 1, 0
        %v1469 = vsel %vm1461, 1, 0
        %v1470 = vsel %vm1462, 1, 0
        %v1471 = vsel %vm1463, 1, 0
        %v1472 = vsel %vm1464, 1, 0
        %v1473 = vsel %vm1465, 1, 0
        %v1474 = vcvt.s32.f32 %v1466
        %v1475 = vcvt.s32.f32 %v1467
        %v1476 = vcvt.s32.f32 %v1468
        %v1477 = vcvt.s32.f32 %v1469
        %v1478 = vcvt.s32.f32 %v1470
        %v1479 = vcvt.s32.f32 %v1471
        %v1480 = vcvt.s32.f32 %v1472
        %v1481 = vcvt.s32.f32 %v1473
        %v1482 = vmul.f32 %v1474, %v439
        %v1483 = vmul.f32 %v1475, %v442
        %v1484 = vmul.f32 %v1476, %v445
        %v1485 = vmul.f32 %v1477, %v448
        %v1486 = vmul.f32 %v1478, %v451
        %v1487 = vmul.f32 %v1479, %v454
        %v1488 = vmul.f32 %v1480, %v457
        %v1489 = vmul.f32 %v1481, %v460
        %vm1490 = vcmask 7168
        %v1491 = vsel %vm1490, %v1482, 0.0
        %v1492 = vsel %vm1490, %v1483, 0.0
        %v1493 = vadd.f32 %v1491, %v1492
        %v1494 = vsel %vm1490, %v1484, 0.0
        %v1495 = vadd.f32 %v1493, %v1494
        %v1496 = vsel %vm1490, %v1485, 0.0
        %v1497 = vadd.f32 %v1495, %v1496
        %v1498 = vsel %vm1490, %v1486, 0.0
        %v1499 = vadd.f32 %v1497, %v1498
        %v1500 = vsel %vm1490, %v1487, 0.0
        %v1501 = vadd.f32 %v1499, %v1500
        %v1502 = vsel %vm1490, %v1488, 0.0
        %v1503 = vadd.f32 %v1501, %v1502
        %v1504 = vsel %vm1490, %v1489, 0.0
        %v1505 = vadd.f32 %v1503, %v1504
        %1506 = vadd.xlane.f32.xlu0 %v1505
        %v1507 = vpop.xlane.xlu0 %1506
        %v1508 = vrot.slane %v1507, 4
        %v1509 = vadd.f32 %v1507, %v1508
        %v1510 = vrot.slane %v1509, 2
        %v1511 = vadd.f32 %v1509, %v1510
        %v1512 = vrot.slane %v1511, 1
        %v1513 = vadd.f32 %v1511, %v1512
        %s1514 = vtos %v1513
        %s1515 = sadd.f32 %s1514, 0.0
        %v1516 = vadd.s32 %v1450, 1
        %v1517 = vadd.s32 %v1451, 1
        %v1518 = vadd.s32 %v1452, 1
        %v1519 = vadd.s32 %v1453, 1
        %v1520 = vadd.s32 %v1454, 1
        %v1521 = vadd.s32 %v1455, 1
        %v1522 = vadd.s32 %v1456, 1
        %v1523 = vadd.s32 %v1457, 1
        %vm1524 = vcmp.lt.s32.totalorder %v1516, 512
        %vm1525 = vcmp.lt.s32.totalorder %v1517, 512
        %vm1526 = vcmp.lt.s32.totalorder %v1518, 512
        %vm1527 = vcmp.lt.s32.totalorder %v1519, 512
        %vm1528 = vcmp.lt.s32.totalorder %v1520, 512
        %vm1529 = vcmp.lt.s32.totalorder %v1521, 512
        %vm1530 = vcmp.lt.s32.totalorder %v1522, 512
        %vm1531 = vcmp.lt.s32.totalorder %v1523, 512
        %v1532 = vsel %vm1524, 1, 0
        %v1533 = vsel %vm1525, 1, 0
        %v1534 = vsel %vm1526, 1, 0
        %v1535 = vsel %vm1527, 1, 0
        %v1536 = vsel %vm1528, 1, 0
        %v1537 = vsel %vm1529, 1, 0
        %v1538 = vsel %vm1530, 1, 0
        %v1539 = vsel %vm1531, 1, 0
        %v1540 = vcvt.s32.f32 %v1532
        %v1541 = vcvt.s32.f32 %v1533
        %v1542 = vcvt.s32.f32 %v1534
        %v1543 = vcvt.s32.f32 %v1535
        %v1544 = vcvt.s32.f32 %v1536
        %v1545 = vcvt.s32.f32 %v1537
        %v1546 = vcvt.s32.f32 %v1538
        %v1547 = vcvt.s32.f32 %v1539
        %v1548 = vmul.f32 %v1540, %v649
        %v1549 = vmul.f32 %v1541, %v652
        %v1550 = vmul.f32 %v1542, %v655
        %v1551 = vmul.f32 %v1543, %v658
        %v1552 = vmul.f32 %v1544, %v661
        %v1553 = vmul.f32 %v1545, %v664
        %v1554 = vmul.f32 %v1546, %v667
        %v1555 = vmul.f32 %v1547, %v670
        %v1556 = vsel %vm1490, %v1548, 0.0
        %v1557 = vsel %vm1490, %v1549, 0.0
        %v1558 = vadd.f32 %v1556, %v1557
        %v1559 = vsel %vm1490, %v1550, 0.0
        %v1560 = vadd.f32 %v1558, %v1559
        %v1561 = vsel %vm1490, %v1551, 0.0
        %v1562 = vadd.f32 %v1560, %v1561
        %v1563 = vsel %vm1490, %v1552, 0.0
        %v1564 = vadd.f32 %v1562, %v1563
        %v1565 = vsel %vm1490, %v1553, 0.0
        %v1566 = vadd.f32 %v1564, %v1565
        %v1567 = vsel %vm1490, %v1554, 0.0
        %v1568 = vadd.f32 %v1566, %v1567
        %v1569 = vsel %vm1490, %v1555, 0.0
        %v1570 = vadd.f32 %v1568, %v1569
        %1571 = vadd.xlane.f32.xlu0 %v1570
        %v1572 = vpop.xlane.xlu0 %1571
        %v1573 = vrot.slane %v1572, 4
        %v1574 = vadd.f32 %v1572, %v1573
        %v1575 = vrot.slane %v1574, 2
        %v1576 = vadd.f32 %v1574, %v1575
        %v1577 = vrot.slane %v1576, 1
        %v1578 = vadd.f32 %v1576, %v1577
        %s1579 = vtos %v1578
        %s1580 = sadd.f32 %s1515, %s1579
        %v1581 = vadd.s32 %v1450, 2
        %v1582 = vadd.s32 %v1451, 2
        %v1583 = vadd.s32 %v1452, 2
        %v1584 = vadd.s32 %v1453, 2
        %v1585 = vadd.s32 %v1454, 2
        %v1586 = vadd.s32 %v1455, 2
        %v1587 = vadd.s32 %v1456, 2
        %v1588 = vadd.s32 %v1457, 2
        %vm1589 = vcmp.lt.s32.totalorder %v1581, 512
        %vm1590 = vcmp.lt.s32.totalorder %v1582, 512
        %vm1591 = vcmp.lt.s32.totalorder %v1583, 512
        %vm1592 = vcmp.lt.s32.totalorder %v1584, 512
        %vm1593 = vcmp.lt.s32.totalorder %v1585, 512
        %vm1594 = vcmp.lt.s32.totalorder %v1586, 512
        %vm1595 = vcmp.lt.s32.totalorder %v1587, 512
        %vm1596 = vcmp.lt.s32.totalorder %v1588, 512
        %v1597 = vsel %vm1589, 1, 0
        %v1598 = vsel %vm1590, 1, 0
        %v1599 = vsel %vm1591, 1, 0
        %v1600 = vsel %vm1592, 1, 0
        %v1601 = vsel %vm1593, 1, 0
        %v1602 = vsel %vm1594, 1, 0
        %v1603 = vsel %vm1595, 1, 0
        %v1604 = vsel %vm1596, 1, 0
        %v1605 = vcvt.s32.f32 %v1597
        %v1606 = vcvt.s32.f32 %v1598
        %v1607 = vcvt.s32.f32 %v1599
        %v1608 = vcvt.s32.f32 %v1600
        %v1609 = vcvt.s32.f32 %v1601
        %v1610 = vcvt.s32.f32 %v1602
        %v1611 = vcvt.s32.f32 %v1603
        %v1612 = vcvt.s32.f32 %v1604
        %v1613 = vmul.f32 %v1605, %v859
        %v1614 = vmul.f32 %v1606, %v862
        %v1615 = vmul.f32 %v1607, %v865
        %v1616 = vmul.f32 %v1608, %v868
        %v1617 = vmul.f32 %v1609, %v871
        %v1618 = vmul.f32 %v1610, %v874
        %v1619 = vmul.f32 %v1611, %v877
        %v1620 = vmul.f32 %v1612, %v880
        %v1621 = vsel %vm1490, %v1613, 0.0
        %v1622 = vsel %vm1490, %v1614, 0.0
        %v1623 = vadd.f32 %v1621, %v1622
        %v1624 = vsel %vm1490, %v1615, 0.0
        %v1625 = vadd.f32 %v1623, %v1624
        %v1626 = vsel %vm1490, %v1616, 0.0
        %v1627 = vadd.f32 %v1625, %v1626
        %v1628 = vsel %vm1490, %v1617, 0.0
        %v1629 = vadd.f32 %v1627, %v1628
        %v1630 = vsel %vm1490, %v1618, 0.0
        %v1631 = vadd.f32 %v1629, %v1630
        %v1632 = vsel %vm1490, %v1619, 0.0
        %v1633 = vadd.f32 %v1631, %v1632
        %v1634 = vsel %vm1490, %v1620, 0.0
        %v1635 = vadd.f32 %v1633, %v1634
        %1636 = vadd.xlane.f32.xlu0 %v1635
        %v1637 = vpop.xlane.xlu0 %1636
        %v1638 = vrot.slane %v1637, 4
        %v1639 = vadd.f32 %v1637, %v1638
        %v1640 = vrot.slane %v1639, 2
        %v1641 = vadd.f32 %v1639, %v1640
        %v1642 = vrot.slane %v1641, 1
        %v1643 = vadd.f32 %v1641, %v1642
        %s1644 = vtos %v1643
        %s1645 = sadd.f32 %s1580, %s1644
        %v1646 = vadd.s32 %v1450, 3
        %v1647 = vadd.s32 %v1451, 3
        %v1648 = vadd.s32 %v1452, 3
        %v1649 = vadd.s32 %v1453, 3
        %v1650 = vadd.s32 %v1454, 3
        %v1651 = vadd.s32 %v1455, 3
        %v1652 = vadd.s32 %v1456, 3
        %v1653 = vadd.s32 %v1457, 3
        %vm1654 = vcmp.lt.s32.totalorder %v1646, 512
        %vm1655 = vcmp.lt.s32.totalorder %v1647, 512
        %vm1656 = vcmp.lt.s32.totalorder %v1648, 512
        %vm1657 = vcmp.lt.s32.totalorder %v1649, 512
        %vm1658 = vcmp.lt.s32.totalorder %v1650, 512
        %vm1659 = vcmp.lt.s32.totalorder %v1651, 512
        %vm1660 = vcmp.lt.s32.totalorder %v1652, 512
        %vm1661 = vcmp.lt.s32.totalorder %v1653, 512
        %v1662 = vsel %vm1654, 1, 0
        %v1663 = vsel %vm1655, 1, 0
        %v1664 = vsel %vm1656, 1, 0
        %v1665 = vsel %vm1657, 1, 0
        %v1666 = vsel %vm1658, 1, 0
        %v1667 = vsel %vm1659, 1, 0
        %v1668 = vsel %vm1660, 1, 0
        %v1669 = vsel %vm1661, 1, 0
        %v1670 = vcvt.s32.f32 %v1662
        %v1671 = vcvt.s32.f32 %v1663
        %v1672 = vcvt.s32.f32 %v1664
        %v1673 = vcvt.s32.f32 %v1665
        %v1674 = vcvt.s32.f32 %v1666
        %v1675 = vcvt.s32.f32 %v1667
        %v1676 = vcvt.s32.f32 %v1668
        %v1677 = vcvt.s32.f32 %v1669
        %v1678 = vmul.f32 %v1670, %v1069
        %v1679 = vmul.f32 %v1671, %v1072
        %v1680 = vmul.f32 %v1672, %v1075
        %v1681 = vmul.f32 %v1673, %v1078
        %v1682 = vmul.f32 %v1674, %v1081
        %v1683 = vmul.f32 %v1675, %v1084
        %v1684 = vmul.f32 %v1676, %v1087
        %v1685 = vmul.f32 %v1677, %v1090
        %v1686 = vsel %vm1490, %v1678, 0.0
        %v1687 = vsel %vm1490, %v1679, 0.0
        %v1688 = vadd.f32 %v1686, %v1687
        %v1689 = vsel %vm1490, %v1680, 0.0
        %v1690 = vadd.f32 %v1688, %v1689
        %v1691 = vsel %vm1490, %v1681, 0.0
        %v1692 = vadd.f32 %v1690, %v1691
        %v1693 = vsel %vm1490, %v1682, 0.0
        %v1694 = vadd.f32 %v1692, %v1693
        %v1695 = vsel %vm1490, %v1683, 0.0
        %v1696 = vadd.f32 %v1694, %v1695
        %v1697 = vsel %vm1490, %v1684, 0.0
        %v1698 = vadd.f32 %v1696, %v1697
        %v1699 = vsel %vm1490, %v1685, 0.0
        %v1700 = vadd.f32 %v1698, %v1699
        %1701 = vadd.xlane.f32.xlu0 %v1700
        %v1702 = vpop.xlane.xlu0 %1701
        %v1703 = vrot.slane %v1702, 4
        %v1704 = vadd.f32 %v1702, %v1703
        %v1705 = vrot.slane %v1704, 2
        %v1706 = vadd.f32 %v1704, %v1705
        %v1707 = vrot.slane %v1706, 1
        %v1708 = vadd.f32 %v1706, %v1707
        %s1709 = vtos %v1708
        %s1710 = sadd.f32 %s1645, %s1709
        %v1711 = vstv %s1710
        %1712 = vst [vmem:[%s247] sm:$0x1] %v1711
      $region40: #{quantizer_forward.1} parent=31 // pred_fallthru
        _
      %s1713 = smul.u32 8, %s17
      %p1714 = scmp.lt.s32.totalorder %s1713, 15
      %s1715 = scalar_select %p1714, %s1713, 15
      %s1716 = smul.addr %s1715, 8
      %s1717 = scalar_lea.vmem %s3, %s1716
      %s1718 = smul.u32 2, %s17
      %p1719 = scmp.lt.s32.totalorder %s1718, 3
      %s1720 = scalar_select %p1719, %s1718, 3
      %s1721 = scalar_lea.vmem %s4, %s1720
      %p1722 = scmp.lt.s32.totalorder %s17, 1
      %s1723 = scalar_select %p1722, %s17, 1
      %s1724 = scalar_lea.vmem %s5, %s1723
      // Predicated region
      $region41: #{quantizer_forward.1} parent=31 // pred_check
        %p1725 = pneg %p103
      $region42: #{quantizer_forward.1} parent=31 // pred_check_branch
        %1727 = sbr.rel (%p1725) target = $region44
      $region43: #{quantizer_forward.1} parent=31 // pred_region
        %s1728 = smul.u32 8, %s17
      $region44: #{quantizer_forward.1} parent=31 // pred_fallthru
        _
      // Predicated region
      $region45: #{quantizer_forward.1} parent=31 // pred_check
        %p1729 = pneg %p129
      $region46: #{quantizer_forward.1} parent=31 // pred_check_branch
        %1731 = sbr.rel (%p1729) target = $region48
      $region47: #{quantizer_forward.1} parent=31 // pred_region
        %s1732 = smul.u32 2, %s17
      $region48: #{quantizer_forward.1} parent=31 // pred_fallthru
        _
      // Predicated region
      $region49: #{quantizer_forward.1} parent=31 // pred_check
        %p1733 = pneg %p155
      $region50: #{quantizer_forward.1} parent=31 // pred_check_branch
        %1735 = sbr.rel (%p1733) target = $region52
      $region51: #{quantizer_forward.1} parent=31 // pred_region
        _
      $region52: #{quantizer_forward.1} parent=31 // pred_fallthru
        _
    $region32: #{quantizer_forward.1} parent=5 // pred_fallthru
      _
    %p1736 = scmp.le.s32.totalorder 2, %s12
    // Predicated region
    $region53: #{quantizer_forward.1} parent=5 // pred_check
      %p1737 = pneg %p1736
    $region54: #{quantizer_forward.1} parent=5 // pred_check_branch
      %1739 = sbr.rel (%p1737) target = $region56
    $region55: #{quantizer_forward.1} parent=5 // pred_region
      %s1740 = ssub.s32 %s12, 2
      // Predicated region
      $region57: #{quantizer_forward.1} parent=55 // pred_check
        %p1741 = pneg %p109
      $region58: #{quantizer_forward.1} parent=55 // pred_check_branch
        %1743 = sbr.rel (%p1741) target = $region60
      $region59: #{quantizer_forward.1} parent=55 // pred_region
        %s1744 = smul.u32 8, %s18
        %p1745 = scmp.lt.s32.totalorder %s1744, 15
        %s1746 = scalar_select %p1745, %s1744, 15
        %s1747 = smul.addr %s1746, 8
        %s1748 = scalar_lea.vmem %s3, %s1747
      $region60: #{quantizer_forward.1} parent=55 // pred_fallthru
        _
      // Predicated region
      $region61: #{quantizer_forward.1} parent=55 // pred_check
        %p1749 = pneg %p135
      $region62: #{quantizer_forward.1} parent=55 // pred_check_branch
        %1751 = sbr.rel (%p1749) target = $region64
      $region63: #{quantizer_forward.1} parent=55 // pred_region
        %s1752 = smul.u32 2, %s18
        %p1753 = scmp.lt.s32.totalorder %s1752, 3
        %s1754 = scalar_select %p1753, %s1752, 3
        %s1755 = scalar_lea.vmem %s4, %s1754
      $region64: #{quantizer_forward.1} parent=55 // pred_fallthru
        _
      // Predicated region
      $region65: #{quantizer_forward.1} parent=55 // pred_check
        %p1756 = pneg %p161
      $region66: #{quantizer_forward.1} parent=55 // pred_check_branch
        %1758 = sbr.rel (%p1756) target = $region68
      $region67: #{quantizer_forward.1} parent=55 // pred_region
        %p1759 = scmp.lt.s32.totalorder %s18, 1
        %s1760 = scalar_select %p1759, %s18, 1
        %s1761 = scalar_lea.vmem %s5, %s1760
      $region68: #{quantizer_forward.1} parent=55 // pred_fallthru
        _
    $region56: #{quantizer_forward.1} parent=5 // pred_fallthru
      _
  $region6: #{quantizer_forward.1} parent=0 // loop_footer
    %s16 = sadd.s32 1, %s12
  $region7: #{quantizer_forward.1} parent=0 // loop_footer_branch
    %11 = sbr.rel target = $region3
  $region8: #{quantizer_forward.1} parent=0 // loop_exit
    _

</llo_original>
